<compile_context>
chip_gen: v6e
topology: v6e:2x2x1
jax: 0.10.0
libtpu: 0.0.40
codegen_flags: <defaults>
</compile_context>

<pallas_src>
import math
import jax
import jax.numpy as jnp
from jax.experimental import pallas as pl
from jax.experimental.pallas import tpu as pltpu


def _round_up(x, m):
    return ((x + m - 1) // m) * m


# -----------------------------------------------------------------------------
# Fused kernel factory: stacked LSTM (unrolled time loop) + packed head matmul.
# -----------------------------------------------------------------------------
def _make_fused_kernel(num_layers, T, B_pad, H):
    def kernel(*refs):
        # refs layout:
        #   [0]                      x_flat   (T*B_pad, D0)
        #   [1 + 3l .. 3 + 3l)       wih_l (D_in,4H), whh_l (H,4H), b_l (1,4H)
        #   [1 + 3L]                 w_heads  (H, N_pad)
        #   [2 + 3L]                 b_heads  (1, N_pad)
        #   [3 + 3L]                 out      (B_pad, N_pad)
        #   [4 + 3L]                 hbuf     (T*B_pad, H)  VMEM scratch
        x_ref = refs[0]
        layer_refs = refs[1:1 + 3 * num_layers]
        wh_ref = refs[1 + 3 * num_layers]
        bh_ref = refs[2 + 3 * num_layers]
        out_ref = refs[3 + 3 * num_layers]
        hbuf_ref = refs[4 + 3 * num_layers]

        seq_in = x_ref[...]                       # (T*B_pad, D_in) of layer 0
        h_last = None
        for l in range(num_layers):
            wih_ref = layer_refs[3 * l + 0]
            whh_ref = layer_refs[3 * l + 1]
            b_ref = layer_refs[3 * l + 2]

            # Hoisted input projection + bias for the whole sequence:
            # one MXU push with M = T*B_pad instead of T tiny ones serially.
            gx = (jnp.dot(seq_in, wih_ref[...],
                          preferred_element_type=jnp.float32)
                  + b_ref[...])                   # (T*B_pad, 4H)

            h = jnp.zeros((B_pad, H), jnp.float32)
            c = jnp.zeros((B_pad, H), jnp.float32)
            for t in range(T):                    # static, fully unrolled
                gates = gx[t * B_pad:(t + 1) * B_pad, :] + jnp.dot(
                    h, whh_ref[...], preferred_element_type=jnp.float32)
                s = jax.nn.sigmoid(gates)         # one EUP pass, whole vreg
                i_g = s[:, 0 * H:1 * H]
                f_g = s[:, 1 * H:2 * H]
                o_g = s[:, 3 * H:4 * H]
                g_g = jnp.tanh(gates[:, 2 * H:3 * H])
                c = f_g * c + i_g * g_g
                h = o_g * jnp.tanh(c)
                if l < num_layers - 1:
                    # stash for next layer's hoisted projection (VMEM only,
                    # never written back to HBM)
                    hbuf_ref[t * B_pad:(t + 1) * B_pad, :] = h
            if l < num_layers - 1:
                seq_in = hbuf_ref[...]
            h_last = h

        # All task heads fused into one lane-dense (H, N_pad=128) matmul.
        out_ref[...] = (jnp.dot(h_last, wh_ref[...],
                                preferred_element_type=jnp.float32)
                        + bh_ref[...])

    return kernel


# -----------------------------------------------------------------------------
# Parameter init (deterministic, PyTorch-style uniform(-1/sqrt(H), 1/sqrt(H))).
# -----------------------------------------------------------------------------
def init_params(key, input_size, hidden_size, num_layers, tasks_info):
    k = 1.0 / math.sqrt(hidden_size)
    params = {"hidden_size": hidden_size, "lstm": [], "heads": {}}
    for layer in range(num_layers):
        d_in = input_size if layer == 0 else hidden_size
        key, k1, k2, k3, k4 = jax.random.split(key, 5)
        w_ih = jax.random.uniform(k1, (4 * hidden_size, d_in), jnp.float32, -k, k)
        w_hh = jax.random.uniform(k2, (4 * hidden_size, hidden_size), jnp.float32, -k, k)
        b_ih = jax.random.uniform(k3, (4 * hidden_size,), jnp.float32, -k, k)
        b_hh = jax.random.uniform(k4, (4 * hidden_size,), jnp.float32, -k, k)
        params["lstm"].append({
            "wih": w_ih.T,                       # (D_in, 4H)
            "whh": w_hh.T,                       # (H, 4H)
            "b": (b_ih + b_hh).reshape(1, -1),   # (1, 4H)
        })
    for task, n_classes in tasks_info.items():
        key, k1, k2 = jax.random.split(key, 3)
        w = jax.random.uniform(k1, (n_classes, hidden_size), jnp.float32, -k, k)
        b = jax.random.uniform(k2, (n_classes,), jnp.float32, -k, k)
        params["heads"][task] = {"w": w.T, "b": b}   # (H, N), (N,)

    # Pack all task heads into one lane-dense (H, N_pad) weight + bias.
    n_total = sum(tasks_info.values())
    n_pad = _round_up(max(n_total, 128), 128)
    wh = jnp.zeros((hidden_size, n_pad), jnp.float32)
    bh = jnp.zeros((1, n_pad), jnp.float32)
    layout = {}
    off = 0
    for task, n_classes in tasks_info.items():
        wh = wh.at[:, off:off + n_classes].set(params["heads"][task]["w"])
        bh = bh.at[0, off:off + n_classes].set(params["heads"][task]["b"])
        layout[task] = (off, n_classes)
        off += n_classes
    params["heads_packed"] = {"w": wh, "b": bh}
    params["heads_layout"] = layout
    return params


# -----------------------------------------------------------------------------
# Model forward: single fused pallas_call.
# -----------------------------------------------------------------------------
def multi_task_lstm_forward(x_btd, params):
    B, T, D = x_btd.shape
    H = params["hidden_size"]
    num_layers = len(params["lstm"])
    B_pad = _round_up(max(B, 8), 8)              # one sublane tile per step

    # Time-major, pad batch to B_pad, flatten to (T*B_pad, D).
    x_tbd = jnp.transpose(x_btd, (1, 0, 2))
    x_pad = jnp.zeros((T, B_pad, D), jnp.float32).at[:, :B, :].set(x_tbd)
    x_flat = x_pad.reshape(T * B_pad, D)

    wh = params["heads_packed"]["w"]             # (H, N_pad)
    bh = params["heads_packed"]["b"]             # (1, N_pad)
    n_pad = wh.shape[1]

    inputs = [x_flat]
    for layer in params["lstm"]:
        inputs += [layer["wih"], layer["whh"], layer["b"]]
    inputs += [wh, bh]

    kernel = _make_fused_kernel(num_layers, T, B_pad, H)
    logits_pad = pl.pallas_call(
        kernel,
        out_shape=jax.ShapeDtypeStruct((B_pad, n_pad), jnp.float32),
        scratch_shapes=[pltpu.VMEM((T * B_pad, H), jnp.float32)],
        # NOTE: at production sizes on v7x (64 MiB VMEM / TC), set
        # pltpu.CompilerParams(vmem_limit_bytes=...) and re-derive tiling;
        # at these toy sizes everything fits comfortably in the default.
    )(*inputs)

    out = {}
    for task, (off, n) in params["heads_layout"].items():
        out[task] = logits_pad[:B, off:off + n]
    return out


# -----------------------------------------------------------------------------
# Pure-JAX reference (for correctness check only).
# -----------------------------------------------------------------------------
def reference_forward(x_btd, params):
    B = x_btd.shape[0]
    h_seq = x_btd
    for layer in params["lstm"]:
        H = layer["whh"].shape[0]
        h = jnp.zeros((B, H), jnp.float32)
        c = jnp.zeros((B, H), jnp.float32)
        outs = []
        for t in range(h_seq.shape[1]):
            gates = h_seq[:, t, :] @ layer["wih"] + h @ layer["whh"] + layer["b"]
            i = jax.nn.sigmoid(gates[:, 0 * H:1 * H])
            f = jax.nn.sigmoid(gates[:, 1 * H:2 * H])
            g = jnp.tanh(gates[:, 2 * H:3 * H])
            o = jax.nn.sigmoid(gates[:, 3 * H:4 * H])
            c = f * c + i * g
            h = o * jnp.tanh(c)
            outs.append(h)
        h_seq = jnp.stack(outs, axis=1)
    last_hidden = h_seq[:, -1, :]
    return {task: last_hidden @ p["w"] + p["b"]
            for task, p in params["heads"].items()}


if __name__ == "__main__":
    # Small shapes consistent with the module's forward.
    B, T = 2, 8
    input_size, hidden_size, num_layers = 16, 32, 2
    tasks_info = {"task_a": 3, "task_b": 5}

    key = jax.random.PRNGKey(0)
    key, pkey, xkey = jax.random.split(key, 3)
    params = init_params(pkey, input_size, hidden_size, num_layers, tasks_info)
    x = jax.random.normal(xkey, (B, T, input_size), jnp.float32)

    out = multi_task_lstm_forward(x, params)
    out = jax.tree_util.tree_map(jax.block_until_ready, out)

    ref = reference_forward(x, params)
    for task in tasks_info:
        assert out[task].shape == (B, tasks_info[task])
        assert jnp.allclose(out[task], ref[task], rtol=1e-3, atol=1e-3), task

    print("KERNEL_OK")
</pallas_src>

<mosaic_0001>
module attributes {stable_mosaic.version = 11 : i64} {
  func.func @kernel(%arg0: memref<64x16xf32, #tpu.memory_space<vmem>>, %arg1: memref<16x128xf32, #tpu.memory_space<vmem>>, %arg2: memref<32x128xf32, #tpu.memory_space<vmem>>, %arg3: memref<1x128xf32, #tpu.memory_space<vmem>>, %arg4: memref<32x128xf32, #tpu.memory_space<vmem>>, %arg5: memref<32x128xf32, #tpu.memory_space<vmem>>, %arg6: memref<1x128xf32, #tpu.memory_space<vmem>>, %arg7: memref<32x128xf32, #tpu.memory_space<vmem>>, %arg8: memref<1x128xf32, #tpu.memory_space<vmem>>, %arg9: memref<8x128xf32, #tpu.memory_space<vmem>>, %arg10: memref<64x32xf32, #tpu.memory_space<vmem>>) attributes {dimension_semantics = [], scalar_prefetch = 0 : i64, scratch_operands = 1 : i64, tpu.core_type = #tpu.core_type<tc>} {
    %c0 = arith.constant 0 : index
    %c0_0 = arith.constant 0 : index
    %0 = vector.load %arg0[%c0, %c0_0] : memref<64x16xf32, #tpu.memory_space<vmem>>, vector<64x16xf32>
    %c0_1 = arith.constant 0 : index
    %c0_2 = arith.constant 0 : index
    %1 = vector.load %arg1[%c0_1, %c0_2] : memref<16x128xf32, #tpu.memory_space<vmem>>, vector<16x128xf32>
    %cst = arith.constant dense<0.000000e+00> : vector<64x128xf32>
    %2 = tpu.matmul %0, %1, %cst {dimension_numbers = #tpu.dot_dimension_numbers<[1], [0], [0], [1], [0, 0, 1, 1], [], []>} : vector<64x16xf32>, vector<16x128xf32>, vector<64x128xf32> -> vector<64x128xf32>
    %c0_3 = arith.constant 0 : index
    %c0_4 = arith.constant 0 : index
    %3 = vector.load %arg3[%c0_3, %c0_4] : memref<1x128xf32, #tpu.memory_space<vmem>>, vector<1x128xf32>
    %4 = vector.broadcast %3 : vector<1x128xf32> to vector<64x128xf32>
    %5 = arith.addf %2, %4 : vector<64x128xf32>
    %cst_5 = arith.constant 0.000000e+00 : f32
    %6 = vector.broadcast %cst_5 : f32 to vector<8x32xf32>
    %cst_6 = arith.constant 0.000000e+00 : f32
    %7 = vector.broadcast %cst_6 : f32 to vector<8x32xf32>
    %8 = vector.extract_strided_slice %5 {offsets = [0, 0], sizes = [8, 128], strides = [1, 1]} : vector<64x128xf32> to vector<8x128xf32>
    %c0_7 = arith.constant 0 : index
    %c0_8 = arith.constant 0 : index
    %9 = vector.load %arg2[%c0_7, %c0_8] : memref<32x128xf32, #tpu.memory_space<vmem>>, vector<32x128xf32>
    %cst_9 = arith.constant dense<0.000000e+00> : vector<8x128xf32>
    %10 = tpu.matmul %6, %9, %cst_9 {dimension_numbers = #tpu.dot_dimension_numbers<[1], [0], [0], [1], [0, 0, 1, 1], [], []>} : vector<8x32xf32>, vector<32x128xf32>, vector<8x128xf32> -> vector<8x128xf32>
    %11 = arith.addf %8, %10 : vector<8x128xf32>
    %12 = arith.negf %11 : vector<8x128xf32>
    %13 = math.exp %12 : vector<8x128xf32>
    %cst_10 = arith.constant 1.000000e+00 : f32
    %14 = vector.broadcast %cst_10 : f32 to vector<8x128xf32>
    %15 = arith.addf %14, %13 : vector<8x128xf32>
    %16 = arith.divf %14, %15 : vector<8x128xf32>
    %17 = vector.extract_strided_slice %16 {offsets = [0, 0], sizes = [8, 32], strides = [1, 1]} : vector<8x128xf32> to vector<8x32xf32>
    %18 = vector.extract_strided_slice %16 {offsets = [0, 32], sizes = [8, 32], strides = [1, 1]} : vector<8x128xf32> to vector<8x32xf32>
    %19 = vector.extract_strided_slice %16 {offsets = [0, 96], sizes = [8, 32], strides = [1, 1]} : vector<8x128xf32> to vector<8x32xf32>
    %20 = vector.extract_strided_slice %11 {offsets = [0, 64], sizes = [8, 32], strides = [1, 1]} : vector<8x128xf32> to vector<8x32xf32>
    %21 = math.tanh %20 : vector<8x32xf32>
    %22 = arith.mulf %18, %7 : vector<8x32xf32>
    %23 = arith.mulf %17, %21 : vector<8x32xf32>
    %24 = arith.addf %22, %23 : vector<8x32xf32>
    %25 = math.tanh %24 : vector<8x32xf32>
    %26 = arith.mulf %19, %25 : vector<8x32xf32>
    %c0_11 = arith.constant 0 : index
    %c0_12 = arith.constant 0 : index
    %27 = vector.load %arg10[%c0_11, %c0_12] : memref<64x32xf32, #tpu.memory_space<vmem>>, vector<8x32xf32>
    tpu.vector_store %arg10[%c0_11, %c0_12], %26 {strides = array<i32>} : memref<64x32xf32, #tpu.memory_space<vmem>>, vector<8x32xf32>,
    %28 = vector.extract_strided_slice %5 {offsets = [8, 0], sizes = [8, 128], strides = [1, 1]} : vector<64x128xf32> to vector<8x128xf32>
    %c0_13 = arith.constant 0 : index
    %c0_14 = arith.constant 0 : index
    %29 = vector.load %arg2[%c0_13, %c0_14] : memref<32x128xf32, #tpu.memory_space<vmem>>, vector<32x128xf32>
    %cst_15 = arith.constant dense<0.000000e+00> : vector<8x128xf32>
    %30 = tpu.matmul %26, %29, %cst_15 {dimension_numbers = #tpu.dot_dimension_numbers<[1], [0], [0], [1], [0, 0, 1, 1], [], []>} : vector<8x32xf32>, vector<32x128xf32>, vector<8x128xf32> -> vector<8x128xf32>
    %31 = arith.addf %28, %30 : vector<8x128xf32>
    %32 = arith.negf %31 : vector<8x128xf32>
    %33 = math.exp %32 : vector<8x128xf32>
    %cst_16 = arith.constant 1.000000e+00 : f32
    %34 = vector.broadcast %cst_16 : f32 to vector<8x128xf32>
    %35 = arith.addf %34, %33 : vector<8x128xf32>
    %36 = arith.divf %34, %35 : vector<8x128xf32>
    %37 = vector.extract_strided_slice %36 {offsets = [0, 0], sizes = [8, 32], strides = [1, 1]} : vector<8x128xf32> to vector<8x32xf32>
    %38 = vector.extract_strided_slice %36 {offsets = [0, 32], sizes = [8, 32], strides = [1, 1]} : vector<8x128xf32> to vector<8x32xf32>
    %39 = vector.extract_strided_slice %36 {offsets = [0, 96], sizes = [8, 32], strides = [1, 1]} : vector<8x128xf32> to vector<8x32xf32>
    %40 = vector.extract_strided_slice %31 {offsets = [0, 64], sizes = [8, 32], strides = [1, 1]} : vector<8x128xf32> to vector<8x32xf32>
    %41 = math.tanh %40 : vector<8x32xf32>
    %42 = arith.mulf %38, %24 : vector<8x32xf32>
    %43 = arith.mulf %37, %41 : vector<8x32xf32>
    %44 = arith.addf %42, %43 : vector<8x32xf32>
    %45 = math.tanh %44 : vector<8x32xf32>
    %46 = arith.mulf %39, %45 : vector<8x32xf32>
    %c8 = arith.constant 8 : index
    %c0_17 = arith.constant 0 : index
    %47 = vector.load %arg10[%c8, %c0_17] : memref<64x32xf32, #tpu.memory_space<vmem>>, vector<8x32xf32>
    tpu.vector_store %arg10[%c8, %c0_17], %46 {strides = array<i32>} : memref<64x32xf32, #tpu.memory_space<vmem>>, vector<8x32xf32>,
    %48 = vector.extract_strided_slice %5 {offsets = [16, 0], sizes = [8, 128], strides = [1, 1]} : vector<64x128xf32> to vector<8x128xf32>
    %c0_18 = arith.constant 0 : index
    %c0_19 = arith.constant 0 : index
    %49 = vector.load %arg2[%c0_18, %c0_19] : memref<32x128xf32, #tpu.memory_space<vmem>>, vector<32x128xf32>
    %cst_20 = arith.constant dense<0.000000e+00> : vector<8x128xf32>
    %50 = tpu.matmul %46, %49, %cst_20 {dimension_numbers = #tpu.dot_dimension_numbers<[1], [0], [0], [1], [0, 0, 1, 1], [], []>} : vector<8x32xf32>, vector<32x128xf32>, vector<8x128xf32> -> vector<8x128xf32>
    %51 = arith.addf %48, %50 : vector<8x128xf32>
    %52 = arith.negf %51 : vector<8x128xf32>
    %53 = math.exp %52 : vector<8x128xf32>
    %cst_21 = arith.constant 1.000000e+00 : f32
    %54 = vector.broadcast %cst_21 : f32 to vector<8x128xf32>
    %55 = arith.addf %54, %53 : vector<8x128xf32>
    %56 = arith.divf %54, %55 : vector<8x128xf32>
    %57 = vector.extract_strided_slice %56 {offsets = [0, 0], sizes = [8, 32], strides = [1, 1]} : vector<8x128xf32> to vector<8x32xf32>
    %58 = vector.extract_strided_slice %56 {offsets = [0, 32], sizes = [8, 32], strides = [1, 1]} : vector<8x128xf32> to vector<8x32xf32>
    %59 = vector.extract_strided_slice %56 {offsets = [0, 96], sizes = [8, 32], strides = [1, 1]} : vector<8x128xf32> to vector<8x32xf32>
    %60 = vector.extract_strided_slice %51 {offsets = [0, 64], sizes = [8, 32], strides = [1, 1]} : vector<8x128xf32> to vector<8x32xf32>
    %61 = math.tanh %60 : vector<8x32xf32>
    %62 = arith.mulf %58, %44 : vector<8x32xf32>
    %63 = arith.mulf %57, %61 : vector<8x32xf32>
    %64 = arith.addf %62, %63 : vector<8x32xf32>
    %65 = math.tanh %64 : vector<8x32xf32>
    %66 = arith.mulf %59, %65 : vector<8x32xf32>
    %c16 = arith.constant 16 : index
    %c0_22 = arith.constant 0 : index
    %67 = vector.load %arg10[%c16, %c0_22] : memref<64x32xf32, #tpu.memory_space<vmem>>, vector<8x32xf32>
    tpu.vector_store %arg10[%c16, %c0_22], %66 {strides = array<i32>} : memref<64x32xf32, #tpu.memory_space<vmem>>, vector<8x32xf32>,
    %68 = vector.extract_strided_slice %5 {offsets = [24, 0], sizes = [8, 128], strides = [1, 1]} : vector<64x128xf32> to vector<8x128xf32>
    %c0_23 = arith.constant 0 : index
    %c0_24 = arith.constant 0 : index
    %69 = vector.load %arg2[%c0_23, %c0_24] : memref<32x128xf32, #tpu.memory_space<vmem>>, vector<32x128xf32>
    %cst_25 = arith.constant dense<0.000000e+00> : vector<8x128xf32>
    %70 = tpu.matmul %66, %69, %cst_25 {dimension_numbers = #tpu.dot_dimension_numbers<[1], [0], [0], [1], [0, 0, 1, 1], [], []>} : vector<8x32xf32>, vector<32x128xf32>, vector<8x128xf32> -> vector<8x128xf32>
    %71 = arith.addf %68, %70 : vector<8x128xf32>
    %72 = arith.negf %71 : vector<8x128xf32>
    %73 = math.exp %72 : vector<8x128xf32>
    %cst_26 = arith.constant 1.000000e+00 : f32
    %74 = vector.broadcast %cst_26 : f32 to vector<8x128xf32>
    %75 = arith.addf %74, %73 : vector<8x128xf32>
    %76 = arith.divf %74, %75 : vector<8x128xf32>
    %77 = vector.extract_strided_slice %76 {offsets = [0, 0], sizes = [8, 32], strides = [1, 1]} : vector<8x128xf32> to vector<8x32xf32>
    %78 = vector.extract_strided_slice %76 {offsets = [0, 32], sizes = [8, 32], strides = [1, 1]} : vector<8x128xf32> to vector<8x32xf32>
    %79 = vector.extract_strided_slice %76 {offsets = [0, 96], sizes = [8, 32], strides = [1, 1]} : vector<8x128xf32> to vector<8x32xf32>
    %80 = vector.extract_strided_slice %71 {offsets = [0, 64], sizes = [8, 32], strides = [1, 1]} : vector<8x128xf32> to vector<8x32xf32>
    %81 = math.tanh %80 : vector<8x32xf32>
    %82 = arith.mulf %78, %64 : vector<8x32xf32>
    %83 = arith.mulf %77, %81 : vector<8x32xf32>
    %84 = arith.addf %82, %83 : vector<8x32xf32>
    %85 = math.tanh %84 : vector<8x32xf32>
    %86 = arith.mulf %79, %85 : vector<8x32xf32>
    %c24 = arith.constant 24 : index
    %c0_27 = arith.constant 0 : index
    %87 = vector.load %arg10[%c24, %c0_27] : memref<64x32xf32, #tpu.memory_space<vmem>>, vector<8x32xf32>
    tpu.vector_store %arg10[%c24, %c0_27], %86 {strides = array<i32>} : memref<64x32xf32, #tpu.memory_space<vmem>>, vector<8x32xf32>,
    %88 = vector.extract_strided_slice %5 {offsets = [32, 0], sizes = [8, 128], strides = [1, 1]} : vector<64x128xf32> to vector<8x128xf32>
    %c0_28 = arith.constant 0 : index
    %c0_29 = arith.constant 0 : index
    %89 = vector.load %arg2[%c0_28, %c0_29] : memref<32x128xf32, #tpu.memory_space<vmem>>, vector<32x128xf32>
    %cst_30 = arith.constant dense<0.000000e+00> : vector<8x128xf32>
    %90 = tpu.matmul %86, %89, %cst_30 {dimension_numbers = #tpu.dot_dimension_numbers<[1], [0], [0], [1], [0, 0, 1, 1], [], []>} : vector<8x32xf32>, vector<32x128xf32>, vector<8x128xf32> -> vector<8x128xf32>
    %91 = arith.addf %88, %90 : vector<8x128xf32>
    %92 = arith.negf %91 : vector<8x128xf32>
    %93 = math.exp %92 : vector<8x128xf32>
    %cst_31 = arith.constant 1.000000e+00 : f32
    %94 = vector.broadcast %cst_31 : f32 to vector<8x128xf32>
    %95 = arith.addf %94, %93 : vector<8x128xf32>
    %96 = arith.divf %94, %95 : vector<8x128xf32>
    %97 = vector.extract_strided_slice %96 {offsets = [0, 0], sizes = [8, 32], strides = [1, 1]} : vector<8x128xf32> to vector<8x32xf32>
    %98 = vector.extract_strided_slice %96 {offsets = [0, 32], sizes = [8, 32], strides = [1, 1]} : vector<8x128xf32> to vector<8x32xf32>
    %99 = vector.extract_strided_slice %96 {offsets = [0, 96], sizes = [8, 32], strides = [1, 1]} : vector<8x128xf32> to vector<8x32xf32>
    %100 = vector.extract_strided_slice %91 {offsets = [0, 64], sizes = [8, 32], strides = [1, 1]} : vector<8x128xf32> to vector<8x32xf32>
    %101 = math.tanh %100 : vector<8x32xf32>
    %102 = arith.mulf %98, %84 : vector<8x32xf32>
    %103 = arith.mulf %97, %101 : vector<8x32xf32>
    %104 = arith.addf %102, %103 : vector<8x32xf32>
    %105 = math.tanh %104 : vector<8x32xf32>
    %106 = arith.mulf %99, %105 : vector<8x32xf32>
    %c32 = arith.constant 32 : index
    %c0_32 = arith.constant 0 : index
    %107 = vector.load %arg10[%c32, %c0_32] : memref<64x32xf32, #tpu.memory_space<vmem>>, vector<8x32xf32>
    tpu.vector_store %arg10[%c32, %c0_32], %106 {strides = array<i32>} : memref<64x32xf32, #tpu.memory_space<vmem>>, vector<8x32xf32>,
    %108 = vector.extract_strided_slice %5 {offsets = [40, 0], sizes = [8, 128], strides = [1, 1]} : vector<64x128xf32> to vector<8x128xf32>
    %c0_33 = arith.constant 0 : index
    %c0_34 = arith.constant 0 : index
    %109 = vector.load %arg2[%c0_33, %c0_34] : memref<32x128xf32, #tpu.memory_space<vmem>>, vector<32x128xf32>
    %cst_35 = arith.constant dense<0.000000e+00> : vector<8x128xf32>
    %110 = tpu.matmul %106, %109, %cst_35 {dimension_numbers = #tpu.dot_dimension_numbers<[1], [0], [0], [1], [0, 0, 1, 1], [], []>} : vector<8x32xf32>, vector<32x128xf32>, vector<8x128xf32> -> vector<8x128xf32>
    %111 = arith.addf %108, %110 : vector<8x128xf32>
    %112 = arith.negf %111 : vector<8x128xf32>
    %113 = math.exp %112 : vector<8x128xf32>
    %cst_36 = arith.constant 1.000000e+00 : f32
    %114 = vector.broadcast %cst_36 : f32 to vector<8x128xf32>
    %115 = arith.addf %114, %113 : vector<8x128xf32>
    %116 = arith.divf %114, %115 : vector<8x128xf32>
    %117 = vector.extract_strided_slice %116 {offsets = [0, 0], sizes = [8, 32], strides = [1, 1]} : vector<8x128xf32> to vector<8x32xf32>
    %118 = vector.extract_strided_slice %116 {offsets = [0, 32], sizes = [8, 32], strides = [1, 1]} : vector<8x128xf32> to vector<8x32xf32>
    %119 = vector.extract_strided_slice %116 {offsets = [0, 96], sizes = [8, 32], strides = [1, 1]} : vector<8x128xf32> to vector<8x32xf32>
    %120 = vector.extract_strided_slice %111 {offsets = [0, 64], sizes = [8, 32], strides = [1, 1]} : vector<8x128xf32> to vector<8x32xf32>
    %121 = math.tanh %120 : vector<8x32xf32>
    %122 = arith.mulf %118, %104 : vector<8x32xf32>
    %123 = arith.mulf %117, %121 : vector<8x32xf32>
    %124 = arith.addf %122, %123 : vector<8x32xf32>
    %125 = math.tanh %124 : vector<8x32xf32>
    %126 = arith.mulf %119, %125 : vector<8x32xf32>
    %c40 = arith.constant 40 : index
    %c0_37 = arith.constant 0 : index
    %127 = vector.load %arg10[%c40, %c0_37] : memref<64x32xf32, #tpu.memory_space<vmem>>, vector<8x32xf32>
    tpu.vector_store %arg10[%c40, %c0_37], %126 {strides = array<i32>} : memref<64x32xf32, #tpu.memory_space<vmem>>, vector<8x32xf32>,
    %128 = vector.extract_strided_slice %5 {offsets = [48, 0], sizes = [8, 128], strides = [1, 1]} : vector<64x128xf32> to vector<8x128xf32>
    %c0_38 = arith.constant 0 : index
    %c0_39 = arith.constant 0 : index
    %129 = vector.load %arg2[%c0_38, %c0_39] : memref<32x128xf32, #tpu.memory_space<vmem>>, vector<32x128xf32>
    %cst_40 = arith.constant dense<0.000000e+00> : vector<8x128xf32>
    %130 = tpu.matmul %126, %129, %cst_40 {dimension_numbers = #tpu.dot_dimension_numbers<[1], [0], [0], [1], [0, 0, 1, 1], [], []>} : vector<8x32xf32>, vector<32x128xf32>, vector<8x128xf32> -> vector<8x128xf32>
    %131 = arith.addf %128, %130 : vector<8x128xf32>
    %132 = arith.negf %131 : vector<8x128xf32>
    %133 = math.exp %132 : vector<8x128xf32>
    %cst_41 = arith.constant 1.000000e+00 : f32
    %134 = vector.broadcast %cst_41 : f32 to vector<8x128xf32>
    %135 = arith.addf %134, %133 : vector<8x128xf32>
    %136 = arith.divf %134, %135 : vector<8x128xf32>
    %137 = vector.extract_strided_slice %136 {offsets = [0, 0], sizes = [8, 32], strides = [1, 1]} : vector<8x128xf32> to vector<8x32xf32>
    %138 = vector.extract_strided_slice %136 {offsets = [0, 32], sizes = [8, 32], strides = [1, 1]} : vector<8x128xf32> to vector<8x32xf32>
    %139 = vector.extract_strided_slice %136 {offsets = [0, 96], sizes = [8, 32], strides = [1, 1]} : vector<8x128xf32> to vector<8x32xf32>
    %140 = vector.extract_strided_slice %131 {offsets = [0, 64], sizes = [8, 32], strides = [1, 1]} : vector<8x128xf32> to vector<8x32xf32>
    %141 = math.tanh %140 : vector<8x32xf32>
    %142 = arith.mulf %138, %124 : vector<8x32xf32>
    %143 = arith.mulf %137, %141 : vector<8x32xf32>
    %144 = arith.addf %142, %143 : vector<8x32xf32>
    %145 = math.tanh %144 : vector<8x32xf32>
    %146 = arith.mulf %139, %145 : vector<8x32xf32>
    %c48 = arith.constant 48 : index
    %c0_42 = arith.constant 0 : index
    %147 = vector.load %arg10[%c48, %c0_42] : memref<64x32xf32, #tpu.memory_space<vmem>>, vector<8x32xf32>
    tpu.vector_store %arg10[%c48, %c0_42], %146 {strides = array<i32>} : memref<64x32xf32, #tpu.memory_space<vmem>>, vector<8x32xf32>,
    %148 = vector.extract_strided_slice %5 {offsets = [56, 0], sizes = [8, 128], strides = [1, 1]} : vector<64x128xf32> to vector<8x128xf32>
    %c0_43 = arith.constant 0 : index
    %c0_44 = arith.constant 0 : index
    %149 = vector.load %arg2[%c0_43, %c0_44] : memref<32x128xf32, #tpu.memory_space<vmem>>, vector<32x128xf32>
    %cst_45 = arith.constant dense<0.000000e+00> : vector<8x128xf32>
    %150 = tpu.matmul %146, %149, %cst_45 {dimension_numbers = #tpu.dot_dimension_numbers<[1], [0], [0], [1], [0, 0, 1, 1], [], []>} : vector<8x32xf32>, vector<32x128xf32>, vector<8x128xf32> -> vector<8x128xf32>
    %151 = arith.addf %148, %150 : vector<8x128xf32>
    %152 = arith.negf %151 : vector<8x128xf32>
    %153 = math.exp %152 : vector<8x128xf32>
    %cst_46 = arith.constant 1.000000e+00 : f32
    %154 = vector.broadcast %cst_46 : f32 to vector<8x128xf32>
    %155 = arith.addf %154, %153 : vector<8x128xf32>
    %156 = arith.divf %154, %155 : vector<8x128xf32>
    %157 = vector.extract_strided_slice %156 {offsets = [0, 0], sizes = [8, 32], strides = [1, 1]} : vector<8x128xf32> to vector<8x32xf32>
    %158 = vector.extract_strided_slice %156 {offsets = [0, 32], sizes = [8, 32], strides = [1, 1]} : vector<8x128xf32> to vector<8x32xf32>
    %159 = vector.extract_strided_slice %156 {offsets = [0, 96], sizes = [8, 32], strides = [1, 1]} : vector<8x128xf32> to vector<8x32xf32>
    %160 = vector.extract_strided_slice %151 {offsets = [0, 64], sizes = [8, 32], strides = [1, 1]} : vector<8x128xf32> to vector<8x32xf32>
    %161 = math.tanh %160 : vector<8x32xf32>
    %162 = arith.mulf %158, %144 : vector<8x32xf32>
    %163 = arith.mulf %157, %161 : vector<8x32xf32>
    %164 = arith.addf %162, %163 : vector<8x32xf32>
    %165 = math.tanh %164 : vector<8x32xf32>
    %166 = arith.mulf %159, %165 : vector<8x32xf32>
    %c56 = arith.constant 56 : index
    %c0_47 = arith.constant 0 : index
    %167 = vector.load %arg10[%c56, %c0_47] : memref<64x32xf32, #tpu.memory_space<vmem>>, vector<8x32xf32>
    tpu.vector_store %arg10[%c56, %c0_47], %166 {strides = array<i32>} : memref<64x32xf32, #tpu.memory_space<vmem>>, vector<8x32xf32>,
    %c0_48 = arith.constant 0 : index
    %c0_49 = arith.constant 0 : index
    %168 = vector.load %arg10[%c0_48, %c0_49] : memref<64x32xf32, #tpu.memory_space<vmem>>, vector<64x32xf32>
    %c0_50 = arith.constant 0 : index
    %c0_51 = arith.constant 0 : index
    %169 = vector.load %arg4[%c0_50, %c0_51] : memref<32x128xf32, #tpu.memory_space<vmem>>, vector<32x128xf32>
    %cst_52 = arith.constant dense<0.000000e+00> : vector<64x128xf32>
    %170 = tpu.matmul %168, %169, %cst_52 {dimension_numbers = #tpu.dot_dimension_numbers<[1], [0], [0], [1], [0, 0, 1, 1], [], []>} : vector<64x32xf32>, vector<32x128xf32>, vector<64x128xf32> -> vector<64x128xf32>
    %c0_53 = arith.constant 0 : index
    %c0_54 = arith.constant 0 : index
    %171 = vector.load %arg6[%c0_53, %c0_54] : memref<1x128xf32, #tpu.memory_space<vmem>>, vector<1x128xf32>
    %172 = vector.broadcast %171 : vector<1x128xf32> to vector<64x128xf32>
    %173 = arith.addf %170, %172 : vector<64x128xf32>
    %cst_55 = arith.constant 0.000000e+00 : f32
    %174 = vector.broadcast %cst_55 : f32 to vector<8x32xf32>
    %cst_56 = arith.constant 0.000000e+00 : f32
    %175 = vector.broadcast %cst_56 : f32 to vector<8x32xf32>
    %176 = vector.extract_strided_slice %173 {offsets = [0, 0], sizes = [8, 128], strides = [1, 1]} : vector<64x128xf32> to vector<8x128xf32>
    %c0_57 = arith.constant 0 : index
    %c0_58 = arith.constant 0 : index
    %177 = vector.load %arg5[%c0_57, %c0_58] : memref<32x128xf32, #tpu.memory_space<vmem>>, vector<32x128xf32>
    %cst_59 = arith.constant dense<0.000000e+00> : vector<8x128xf32>
    %178 = tpu.matmul %174, %177, %cst_59 {dimension_numbers = #tpu.dot_dimension_numbers<[1], [0], [0], [1], [0, 0, 1, 1], [], []>} : vector<8x32xf32>, vector<32x128xf32>, vector<8x128xf32> -> vector<8x128xf32>
    %179 = arith.addf %176, %178 : vector<8x128xf32>
    %180 = arith.negf %179 : vector<8x128xf32>
    %181 = math.exp %180 : vector<8x128xf32>
    %cst_60 = arith.constant 1.000000e+00 : f32
    %182 = vector.broadcast %cst_60 : f32 to vector<8x128xf32>
    %183 = arith.addf %182, %181 : vector<8x128xf32>
    %184 = arith.divf %182, %183 : vector<8x128xf32>
    %185 = vector.extract_strided_slice %184 {offsets = [0, 0], sizes = [8, 32], strides = [1, 1]} : vector<8x128xf32> to vector<8x32xf32>
    %186 = vector.extract_strided_slice %184 {offsets = [0, 32], sizes = [8, 32], strides = [1, 1]} : vector<8x128xf32> to vector<8x32xf32>
    %187 = vector.extract_strided_slice %184 {offsets = [0, 96], sizes = [8, 32], strides = [1, 1]} : vector<8x128xf32> to vector<8x32xf32>
    %188 = vector.extract_strided_slice %179 {offsets = [0, 64], sizes = [8, 32], strides = [1, 1]} : vector<8x128xf32> to vector<8x32xf32>
    %189 = math.tanh %188 : vector<8x32xf32>
    %190 = arith.mulf %186, %175 : vector<8x32xf32>
    %191 = arith.mulf %185, %189 : vector<8x32xf32>
    %192 = arith.addf %190, %191 : vector<8x32xf32>
    %193 = math.tanh %192 : vector<8x32xf32>
    %194 = arith.mulf %187, %193 : vector<8x32xf32>
    %195 = vector.extract_strided_slice %173 {offsets = [8, 0], sizes = [8, 128], strides = [1, 1]} : vector<64x128xf32> to vector<8x128xf32>
    %c0_61 = arith.constant 0 : index
    %c0_62 = arith.constant 0 : index
    %196 = vector.load %arg5[%c0_61, %c0_62] : memref<32x128xf32, #tpu.memory_space<vmem>>, vector<32x128xf32>
    %cst_63 = arith.constant dense<0.000000e+00> : vector<8x128xf32>
    %197 = tpu.matmul %194, %196, %cst_63 {dimension_numbers = #tpu.dot_dimension_numbers<[1], [0], [0], [1], [0, 0, 1, 1], [], []>} : vector<8x32xf32>, vector<32x128xf32>, vector<8x128xf32> -> vector<8x128xf32>
    %198 = arith.addf %195, %197 : vector<8x128xf32>
    %199 = arith.negf %198 : vector<8x128xf32>
    %200 = math.exp %199 : vector<8x128xf32>
    %cst_64 = arith.constant 1.000000e+00 : f32
    %201 = vector.broadcast %cst_64 : f32 to vector<8x128xf32>
    %202 = arith.addf %201, %200 : vector<8x128xf32>
    %203 = arith.divf %201, %202 : vector<8x128xf32>
    %204 = vector.extract_strided_slice %203 {offsets = [0, 0], sizes = [8, 32], strides = [1, 1]} : vector<8x128xf32> to vector<8x32xf32>
    %205 = vector.extract_strided_slice %203 {offsets = [0, 32], sizes = [8, 32], strides = [1, 1]} : vector<8x128xf32> to vector<8x32xf32>
    %206 = vector.extract_strided_slice %203 {offsets = [0, 96], sizes = [8, 32], strides = [1, 1]} : vector<8x128xf32> to vector<8x32xf32>
    %207 = vector.extract_strided_slice %198 {offsets = [0, 64], sizes = [8, 32], strides = [1, 1]} : vector<8x128xf32> to vector<8x32xf32>
    %208 = math.tanh %207 : vector<8x32xf32>
    %209 = arith.mulf %205, %192 : vector<8x32xf32>
    %210 = arith.mulf %204, %208 : vector<8x32xf32>
    %211 = arith.addf %209, %210 : vector<8x32xf32>
    %212 = math.tanh %211 : vector<8x32xf32>
    %213 = arith.mulf %206, %212 : vector<8x32xf32>
    %214 = vector.extract_strided_slice %173 {offsets = [16, 0], sizes = [8, 128], strides = [1, 1]} : vector<64x128xf32> to vector<8x128xf32>
    %c0_65 = arith.constant 0 : index
    %c0_66 = arith.constant 0 : index
    %215 = vector.load %arg5[%c0_65, %c0_66] : memref<32x128xf32, #tpu.memory_space<vmem>>, vector<32x128xf32>
    %cst_67 = arith.constant dense<0.000000e+00> : vector<8x128xf32>
    %216 = tpu.matmul %213, %215, %cst_67 {dimension_numbers = #tpu.dot_dimension_numbers<[1], [0], [0], [1], [0, 0, 1, 1], [], []>} : vector<8x32xf32>, vector<32x128xf32>, vector<8x128xf32> -> vector<8x128xf32>
    %217 = arith.addf %214, %216 : vector<8x128xf32>
    %218 = arith.negf %217 : vector<8x128xf32>
    %219 = math.exp %218 : vector<8x128xf32>
    %cst_68 = arith.constant 1.000000e+00 : f32
    %220 = vector.broadcast %cst_68 : f32 to vector<8x128xf32>
    %221 = arith.addf %220, %219 : vector<8x128xf32>
    %222 = arith.divf %220, %221 : vector<8x128xf32>
    %223 = vector.extract_strided_slice %222 {offsets = [0, 0], sizes = [8, 32], strides = [1, 1]} : vector<8x128xf32> to vector<8x32xf32>
    %224 = vector.extract_strided_slice %222 {offsets = [0, 32], sizes = [8, 32], strides = [1, 1]} : vector<8x128xf32> to vector<8x32xf32>
    %225 = vector.extract_strided_slice %222 {offsets = [0, 96], sizes = [8, 32], strides = [1, 1]} : vector<8x128xf32> to vector<8x32xf32>
    %226 = vector.extract_strided_slice %217 {offsets = [0, 64], sizes = [8, 32], strides = [1, 1]} : vector<8x128xf32> to vector<8x32xf32>
    %227 = math.tanh %226 : vector<8x32xf32>
    %228 = arith.mulf %224, %211 : vector<8x32xf32>
    %229 = arith.mulf %223, %227 : vector<8x32xf32>
    %230 = arith.addf %228, %229 : vector<8x32xf32>
    %231 = math.tanh %230 : vector<8x32xf32>
    %232 = arith.mulf %225, %231 : vector<8x32xf32>
    %233 = vector.extract_strided_slice %173 {offsets = [24, 0], sizes = [8, 128], strides = [1, 1]} : vector<64x128xf32> to vector<8x128xf32>
    %c0_69 = arith.constant 0 : index
    %c0_70 = arith.constant 0 : index
    %234 = vector.load %arg5[%c0_69, %c0_70] : memref<32x128xf32, #tpu.memory_space<vmem>>, vector<32x128xf32>
    %cst_71 = arith.constant dense<0.000000e+00> : vector<8x128xf32>
    %235 = tpu.matmul %232, %234, %cst_71 {dimension_numbers = #tpu.dot_dimension_numbers<[1], [0], [0], [1], [0, 0, 1, 1], [], []>} : vector<8x32xf32>, vector<32x128xf32>, vector<8x128xf32> -> vector<8x128xf32>
    %236 = arith.addf %233, %235 : vector<8x128xf32>
    %237 = arith.negf %236 : vector<8x128xf32>
    %238 = math.exp %237 : vector<8x128xf32>
    %cst_72 = arith.constant 1.000000e+00 : f32
    %239 = vector.broadcast %cst_72 : f32 to vector<8x128xf32>
    %240 = arith.addf %239, %238 : vector<8x128xf32>
    %241 = arith.divf %239, %240 : vector<8x128xf32>
    %242 = vector.extract_strided_slice %241 {offsets = [0, 0], sizes = [8, 32], strides = [1, 1]} : vector<8x128xf32> to vector<8x32xf32>
    %243 = vector.extract_strided_slice %241 {offsets = [0, 32], sizes = [8, 32], strides = [1, 1]} : vector<8x128xf32> to vector<8x32xf32>
    %244 = vector.extract_strided_slice %241 {offsets = [0, 96], sizes = [8, 32], strides = [1, 1]} : vector<8x128xf32> to vector<8x32xf32>
    %245 = vector.extract_strided_slice %236 {offsets = [0, 64], sizes = [8, 32], strides = [1, 1]} : vector<8x128xf32> to vector<8x32xf32>
    %246 = math.tanh %245 : vector<8x32xf32>
    %247 = arith.mulf %243, %230 : vector<8x32xf32>
    %248 = arith.mulf %242, %246 : vector<8x32xf32>
    %249 = arith.addf %247, %248 : vector<8x32xf32>
    %250 = math.tanh %249 : vector<8x32xf32>
    %251 = arith.mulf %244, %250 : vector<8x32xf32>
    %252 = vector.extract_strided_slice %173 {offsets = [32, 0], sizes = [8, 128], strides = [1, 1]} : vector<64x128xf32> to vector<8x128xf32>
    %c0_73 = arith.constant 0 : index
    %c0_74 = arith.constant 0 : index
    %253 = vector.load %arg5[%c0_73, %c0_74] : memref<32x128xf32, #tpu.memory_space<vmem>>, vector<32x128xf32>
    %cst_75 = arith.constant dense<0.000000e+00> : vector<8x128xf32>
    %254 = tpu.matmul %251, %253, %cst_75 {dimension_numbers = #tpu.dot_dimension_numbers<[1], [0], [0], [1], [0, 0, 1, 1], [], []>} : vector<8x32xf32>, vector<32x128xf32>, vector<8x128xf32> -> vector<8x128xf32>
    %255 = arith.addf %252, %254 : vector<8x128xf32>
    %256 = arith.negf %255 : vector<8x128xf32>
    %257 = math.exp %256 : vector<8x128xf32>
    %cst_76 = arith.constant 1.000000e+00 : f32
    %258 = vector.broadcast %cst_76 : f32 to vector<8x128xf32>
    %259 = arith.addf %258, %257 : vector<8x128xf32>
    %260 = arith.divf %258, %259 : vector<8x128xf32>
    %261 = vector.extract_strided_slice %260 {offsets = [0, 0], sizes = [8, 32], strides = [1, 1]} : vector<8x128xf32> to vector<8x32xf32>
    %262 = vector.extract_strided_slice %260 {offsets = [0, 32], sizes = [8, 32], strides = [1, 1]} : vector<8x128xf32> to vector<8x32xf32>
    %263 = vector.extract_strided_slice %260 {offsets = [0, 96], sizes = [8, 32], strides = [1, 1]} : vector<8x128xf32> to vector<8x32xf32>
    %264 = vector.extract_strided_slice %255 {offsets = [0, 64], sizes = [8, 32], strides = [1, 1]} : vector<8x128xf32> to vector<8x32xf32>
    %265 = math.tanh %264 : vector<8x32xf32>
    %266 = arith.mulf %262, %249 : vector<8x32xf32>
    %267 = arith.mulf %261, %265 : vector<8x32xf32>
    %268 = arith.addf %266, %267 : vector<8x32xf32>
    %269 = math.tanh %268 : vector<8x32xf32>
    %270 = arith.mulf %263, %269 : vector<8x32xf32>
    %271 = vector.extract_strided_slice %173 {offsets = [40, 0], sizes = [8, 128], strides = [1, 1]} : vector<64x128xf32> to vector<8x128xf32>
    %c0_77 = arith.constant 0 : index
    %c0_78 = arith.constant 0 : index
    %272 = vector.load %arg5[%c0_77, %c0_78] : memref<32x128xf32, #tpu.memory_space<vmem>>, vector<32x128xf32>
    %cst_79 = arith.constant dense<0.000000e+00> : vector<8x128xf32>
    %273 = tpu.matmul %270, %272, %cst_79 {dimension_numbers = #tpu.dot_dimension_numbers<[1], [0], [0], [1], [0, 0, 1, 1], [], []>} : vector<8x32xf32>, vector<32x128xf32>, vector<8x128xf32> -> vector<8x128xf32>
    %274 = arith.addf %271, %273 : vector<8x128xf32>
    %275 = arith.negf %274 : vector<8x128xf32>
    %276 = math.exp %275 : vector<8x128xf32>
    %cst_80 = arith.constant 1.000000e+00 : f32
    %277 = vector.broadcast %cst_80 : f32 to vector<8x128xf32>
    %278 = arith.addf %277, %276 : vector<8x128xf32>
    %279 = arith.divf %277, %278 : vector<8x128xf32>
    %280 = vector.extract_strided_slice %279 {offsets = [0, 0], sizes = [8, 32], strides = [1, 1]} : vector<8x128xf32> to vector<8x32xf32>
    %281 = vector.extract_strided_slice %279 {offsets = [0, 32], sizes = [8, 32], strides = [1, 1]} : vector<8x128xf32> to vector<8x32xf32>
    %282 = vector.extract_strided_slice %279 {offsets = [0, 96], sizes = [8, 32], strides = [1, 1]} : vector<8x128xf32> to vector<8x32xf32>
    %283 = vector.extract_strided_slice %274 {offsets = [0, 64], sizes = [8, 32], strides = [1, 1]} : vector<8x128xf32> to vector<8x32xf32>
    %284 = math.tanh %283 : vector<8x32xf32>
    %285 = arith.mulf %281, %268 : vector<8x32xf32>
    %286 = arith.mulf %280, %284 : vector<8x32xf32>
    %287 = arith.addf %285, %286 : vector<8x32xf32>
    %288 = math.tanh %287 : vector<8x32xf32>
    %289 = arith.mulf %282, %288 : vector<8x32xf32>
    %290 = vector.extract_strided_slice %173 {offsets = [48, 0], sizes = [8, 128], strides = [1, 1]} : vector<64x128xf32> to vector<8x128xf32>
    %c0_81 = arith.constant 0 : index
    %c0_82 = arith.constant 0 : index
    %291 = vector.load %arg5[%c0_81, %c0_82] : memref<32x128xf32, #tpu.memory_space<vmem>>, vector<32x128xf32>
    %cst_83 = arith.constant dense<0.000000e+00> : vector<8x128xf32>
    %292 = tpu.matmul %289, %291, %cst_83 {dimension_numbers = #tpu.dot_dimension_numbers<[1], [0], [0], [1], [0, 0, 1, 1], [], []>} : vector<8x32xf32>, vector<32x128xf32>, vector<8x128xf32> -> vector<8x128xf32>
    %293 = arith.addf %290, %292 : vector<8x128xf32>
    %294 = arith.negf %293 : vector<8x128xf32>
    %295 = math.exp %294 : vector<8x128xf32>
    %cst_84 = arith.constant 1.000000e+00 : f32
    %296 = vector.broadcast %cst_84 : f32 to vector<8x128xf32>
    %297 = arith.addf %296, %295 : vector<8x128xf32>
    %298 = arith.divf %296, %297 : vector<8x128xf32>
    %299 = vector.extract_strided_slice %298 {offsets = [0, 0], sizes = [8, 32], strides = [1, 1]} : vector<8x128xf32> to vector<8x32xf32>
    %300 = vector.extract_strided_slice %298 {offsets = [0, 32], sizes = [8, 32], strides = [1, 1]} : vector<8x128xf32> to vector<8x32xf32>
    %301 = vector.extract_strided_slice %298 {offsets = [0, 96], sizes = [8, 32], strides = [1, 1]} : vector<8x128xf32> to vector<8x32xf32>
    %302 = vector.extract_strided_slice %293 {offsets = [0, 64], sizes = [8, 32], strides = [1, 1]} : vector<8x128xf32> to vector<8x32xf32>
    %303 = math.tanh %302 : vector<8x32xf32>
    %304 = arith.mulf %300, %287 : vector<8x32xf32>
    %305 = arith.mulf %299, %303 : vector<8x32xf32>
    %306 = arith.addf %304, %305 : vector<8x32xf32>
    %307 = math.tanh %306 : vector<8x32xf32>
    %308 = arith.mulf %301, %307 : vector<8x32xf32>
    %309 = vector.extract_strided_slice %173 {offsets = [56, 0], sizes = [8, 128], strides = [1, 1]} : vector<64x128xf32> to vector<8x128xf32>
    %c0_85 = arith.constant 0 : index
    %c0_86 = arith.constant 0 : index
    %310 = vector.load %arg5[%c0_85, %c0_86] : memref<32x128xf32, #tpu.memory_space<vmem>>, vector<32x128xf32>
    %cst_87 = arith.constant dense<0.000000e+00> : vector<8x128xf32>
    %311 = tpu.matmul %308, %310, %cst_87 {dimension_numbers = #tpu.dot_dimension_numbers<[1], [0], [0], [1], [0, 0, 1, 1], [], []>} : vector<8x32xf32>, vector<32x128xf32>, vector<8x128xf32> -> vector<8x128xf32>
    %312 = arith.addf %309, %311 : vector<8x128xf32>
    %313 = arith.negf %312 : vector<8x128xf32>
    %314 = math.exp %313 : vector<8x128xf32>
    %cst_88 = arith.constant 1.000000e+00 : f32
    %315 = vector.broadcast %cst_88 : f32 to vector<8x128xf32>
    %316 = arith.addf %315, %314 : vector<8x128xf32>
    %317 = arith.divf %315, %316 : vector<8x128xf32>
    %318 = vector.extract_strided_slice %317 {offsets = [0, 0], sizes = [8, 32], strides = [1, 1]} : vector<8x128xf32> to vector<8x32xf32>
    %319 = vector.extract_strided_slice %317 {offsets = [0, 32], sizes = [8, 32], strides = [1, 1]} : vector<8x128xf32> to vector<8x32xf32>
    %320 = vector.extract_strided_slice %317 {offsets = [0, 96], sizes = [8, 32], strides = [1, 1]} : vector<8x128xf32> to vector<8x32xf32>
    %321 = vector.extract_strided_slice %312 {offsets = [0, 64], sizes = [8, 32], strides = [1, 1]} : vector<8x128xf32> to vector<8x32xf32>
    %322 = math.tanh %321 : vector<8x32xf32>
    %323 = arith.mulf %319, %306 : vector<8x32xf32>
    %324 = arith.mulf %318, %322 : vector<8x32xf32>
    %325 = arith.addf %323, %324 : vector<8x32xf32>
    %326 = math.tanh %325 : vector<8x32xf32>
    %327 = arith.mulf %320, %326 : vector<8x32xf32>
    %c0_89 = arith.constant 0 : index
    %c0_90 = arith.constant 0 : index
    %328 = vector.load %arg7[%c0_89, %c0_90] : memref<32x128xf32, #tpu.memory_space<vmem>>, vector<32x128xf32>
    %cst_91 = arith.constant dense<0.000000e+00> : vector<8x128xf32>
    %329 = tpu.matmul %327, %328, %cst_91 {dimension_numbers = #tpu.dot_dimension_numbers<[1], [0], [0], [1], [0, 0, 1, 1], [], []>} : vector<8x32xf32>, vector<32x128xf32>, vector<8x128xf32> -> vector<8x128xf32>
    %c0_92 = arith.constant 0 : index
    %c0_93 = arith.constant 0 : index
    %330 = vector.load %arg8[%c0_92, %c0_93] : memref<1x128xf32, #tpu.memory_space<vmem>>, vector<1x128xf32>
    %331 = vector.broadcast %330 : vector<1x128xf32> to vector<8x128xf32>
    %332 = arith.addf %329, %331 : vector<8x128xf32>
    %c0_94 = arith.constant 0 : index
    %c0_95 = arith.constant 0 : index
    %333 = vector.load %arg9[%c0_94, %c0_95] : memref<8x128xf32, #tpu.memory_space<vmem>>, vector<8x128xf32>
    tpu.vector_store %arg9[%c0_94, %c0_95], %332 {strides = array<i32>} : memref<8x128xf32, #tpu.memory_space<vmem>>, vector<8x128xf32>,
    return
  }
}

</mosaic_0001>

<llo_original>
// kernel: tpu_custom_call.1
$region0: #{tpu_custom_call.1}
  #allocation0 [shape = 'u32[]', space=smem, size = 0x4, offset = 0x4, fixed_abs, tag = 'smem constant byte address 0x4 - core index']
  #allocation1 [shape = 'u32[144,128]{1,0:T(1,128)}', space=vmem, size = 0x12000, scoped, tag = 'internal scratch']
  #allocation2 [shape = 'f32[64,32]{1,0:T(8,128)}', space=vmem, size = 0x8000, scoped, tag = 'scratch operand']
  %s0 = inlined_call_operand.vmem [shape: f32[64,16], index: 0, kind: input, shape index: {}]
  %s1 = inlined_call_operand.vmem [shape: f32[16,128], index: 1, kind: input, shape index: {}]
  %s2 = inlined_call_operand.vmem [shape: f32[32,128], index: 2, kind: input, shape index: {}]
  %s3 = inlined_call_operand.vmem [shape: f32[1,128], index: 3, kind: input, shape index: {}]
  %s4 = inlined_call_operand.vmem [shape: f32[32,128], index: 4, kind: input, shape index: {}]
  %s5 = inlined_call_operand.hbm [shape: f32[32,128], index: 5, kind: input, shape index: {}]
  %s6 = inlined_call_operand.vmem [shape: f32[1,128], index: 6, kind: input, shape index: {}]
  %s7 = inlined_call_operand.hbm [shape: f32[32,128], index: 7, kind: input, shape index: {}]
  %s8 = inlined_call_operand.vmem [shape: f32[1,128], index: 8, kind: input, shape index: {}]
  %s9 = inlined_call_operand.hbm [shape: f32[8,128], index: 9, kind: output, shape index: {}]
  %s10 = sld [smem:[#allocation0]]
  $region54: #{tpu_custom_call.1} parent=0
    _
  %s12 = ssub.s32 1, %s10
  %s13 = scalar_select 0, %s12, %s10
  $region1: #{tpu_custom_call.1} parent=0
    #allocation3 [shape = 'u8[16384]{0}', space=vmem, size = 0x4000, scoped, tag = 'input window, operand 5, single buffered']
    #allocation4 [shape = 's32[1]{0}', space=sflag, size = 0x4, scoped, tag = 'scoped memory for tpu_custom_call.1']
    #allocation5 [shape = 's32[1]{0}', space=sflag, size = 0x4, scoped, tag = 'scoped memory for tpu_custom_call.1']
    #allocation6 [shape = 'u8[16384]{0}', space=vmem, size = 0x4000, scoped, tag = 'input window, operand 7, single buffered']
    #allocation7 [shape = 's32[1]{0}', space=sflag, size = 0x4, scoped, tag = 'scoped memory for tpu_custom_call.1']
    #allocation8 [shape = 'u8[4096]{0}', space=vmem, size = 0x1000, scoped, tag = 'output window, operand 0, single buffered']
    %14 = vsyncpa [#allocation4], 0
    %15 = vsyncpa [#allocation7], 0
    %16 = vsyncpa [#allocation5], 0
    // Predicated region
    $region2: #{tpu_custom_call.1} parent=1 // pred_check
      _
    $region3: #{tpu_custom_call.1} parent=1 // pred_check_branch
      %18 = sbr.rel (0) target = $region5
    $region4: #{tpu_custom_call.1} parent=1 // pred_region
      _
    $region5: #{tpu_custom_call.1} parent=1 // pred_fallthru
      _
    // Predicated region
    $region6: #{tpu_custom_call.1} parent=1 // pred_check
      _
    $region7: #{tpu_custom_call.1} parent=1 // pred_check_branch
      %20 = sbr.rel (0) target = $region9
    $region8: #{tpu_custom_call.1} parent=1 // pred_region
      _
    $region9: #{tpu_custom_call.1} parent=1 // pred_fallthru
      _
    // Predicated region
    $region10: #{tpu_custom_call.1} parent=1 // pred_check
      _
    $region11: #{tpu_custom_call.1} parent=1 // pred_check_branch
      %22 = sbr.rel (0) target = $region13
    $region12: #{tpu_custom_call.1} parent=1 // pred_region
      _
    $region13: #{tpu_custom_call.1} parent=1 // pred_fallthru
      _
    // Predicated region
    $region14: #{tpu_custom_call.1} parent=1 // pred_check
      _
    $region15: #{tpu_custom_call.1} parent=1 // pred_check_branch
      %24 = sbr.rel (0) target = $region17
    $region16: #{tpu_custom_call.1} parent=1 // pred_region
      _
    $region17: #{tpu_custom_call.1} parent=1 // pred_fallthru
      _
    // Predicated region
    $region18: #{tpu_custom_call.1} parent=1 // pred_check
      _
    $region19: #{tpu_custom_call.1} parent=1 // pred_check_branch
      %26 = sbr.rel (0) target = $region21
    $region20: #{tpu_custom_call.1} parent=1 // pred_region
      _
    $region21: #{tpu_custom_call.1} parent=1 // pred_fallthru
      _
    // Predicated region
    $region22: #{tpu_custom_call.1} parent=1 // pred_check
      _
    $region23: #{tpu_custom_call.1} parent=1 // pred_check_branch
      %28 = sbr.rel (0) target = $region25
    $region24: #{tpu_custom_call.1} parent=1 // pred_region
      %s30 = ssub.s32 512, 512
      %31 = vsyncadd [#allocation4], %s30
      %s32 = sshll.u32 [#allocation3], 4
      %s33 = int_to_ptr.vmem [resolvable:$true] %s32
      %38 = dma.hbm_to_vmem [thread:$0]  %s5, 512, %s33, [#allocation4], 128, 128, 8
    $region25: #{tpu_custom_call.1} parent=1 // pred_fallthru
      _
    // Predicated region
    $region26: #{tpu_custom_call.1} parent=1 // pred_check
      _
    $region27: #{tpu_custom_call.1} parent=1 // pred_check_branch
      %40 = sbr.rel (0) target = $region29
    $region28: #{tpu_custom_call.1} parent=1 // pred_region
      _
    $region29: #{tpu_custom_call.1} parent=1 // pred_fallthru
      _
    // Predicated region
    $region30: #{tpu_custom_call.1} parent=1 // pred_check
      _
    $region31: #{tpu_custom_call.1} parent=1 // pred_check_branch
      %42 = sbr.rel (0) target = $region33
    $region32: #{tpu_custom_call.1} parent=1 // pred_region
      %s44 = ssub.s32 512, 512
      %45 = vsyncadd [#allocation7], %s44
      %s46 = sshll.u32 [#allocation6], 4
      %s47 = int_to_ptr.vmem [resolvable:$true] %s46
      %52 = dma.hbm_to_vmem [thread:$0]  %s7, 512, %s47, [#allocation7], 128, 128, 8
    $region33: #{tpu_custom_call.1} parent=1 // pred_fallthru
      _
    // Predicated region
    $region34: #{tpu_custom_call.1} parent=1 // pred_check
      _
    $region35: #{tpu_custom_call.1} parent=1 // pred_check_branch
      %54 = sbr.rel (0) target = $region37
    $region36: #{tpu_custom_call.1} parent=1 // pred_region
      _
    $region37: #{tpu_custom_call.1} parent=1 // pred_fallthru
      _
    // Predicated region
    $region38: #{tpu_custom_call.1} parent=1 // pred_check
      _
    $region39: #{tpu_custom_call.1} parent=1 // pred_check_branch
      %56 = sbr.rel (0) target = $region41
    $region40: #{tpu_custom_call.1} parent=1 // pred_region
      %57 = dma.done [#allocation4], 512
    $region41: #{tpu_custom_call.1} parent=1 // pred_fallthru
      _
    // Predicated region
    $region42: #{tpu_custom_call.1} parent=1 // pred_check
      _
    $region43: #{tpu_custom_call.1} parent=1 // pred_check_branch
      %59 = sbr.rel (0) target = $region45
    $region44: #{tpu_custom_call.1} parent=1 // pred_region
      %60 = dma.done [#allocation7], 512
    $region45: #{tpu_custom_call.1} parent=1 // pred_fallthru
      _
    %v61 = vld [vmem:[%s0] sm:$0xff]
    %v62 = vld [vmem:[%s0 + $0x8] sm:$0xff]
    %v63 = vld [vmem:[%s0 + $0x10] sm:$0xff]
    %v64 = vld [vmem:[%s0 + $0x18] sm:$0xff]
    %v65 = vld [vmem:[%s0 + $0x20] sm:$0xff]
    %v66 = vld [vmem:[%s0 + $0x28] sm:$0xff]
    %v67 = vld [vmem:[%s0 + $0x30] sm:$0xff]
    %v68 = vld [vmem:[%s0 + $0x38] sm:$0xff]
    %v69 = vld [vmem:[%s1] sm:$0xff]
    %v70 = vld [vmem:[%s1 + $0x8] sm:$0xff]
    %v71 = vld [vmem:[%s3] sm:$0x1]
    %v73 = vlaneseq
    %v74 = vshrl.u32 %v73, 7
    %v75 = vsub.s32 0, %v74
    %v76 = vrot.slane %v71, %v75
    %vm78 = vcmask 130048
    %v80 = vsel %vm78, %v61, 0
    %v83 = vsel %vm78, %v62, 0
    %v86 = vsel %vm78, %v63, 0
    %v89 = vsel %vm78, %v64, 0
    %v92 = vsel %vm78, %v65, 0
    %v95 = vsel %vm78, %v66, 0
    %v98 = vsel %vm78, %v67, 0
    %v101 = vsel %vm78, %v68, 0
    %103 = vmatprep.subr.mxu0 0.0
    %104 = vmatpush1.msra.mxu0 0.0
    %105 = vmatprep.subr.mxu0 0.0
    %106 = vmatpush1.msra.mxu0 0.0
    %107 = vmatprep.subr.mxu0 0.0
    %108 = vmatpush1.msra.mxu0 0.0
    %109 = vmatprep.subr.mxu0 0.0
    %110 = vmatpush1.msra.mxu0 0.0
    %111 = vmatprep.subr.mxu0 0.0
    %112 = vmatpush1.msra.mxu0 0.0
    %113 = vmatprep.subr.mxu0 0.0
    %114 = vmatpush1.msra.mxu0 0.0
    %115 = vmatprep.subr.mxu0 0.0
    %116 = vmatpush1.msra.mxu0 0.0
    %117 = vmatprep.subr.mxu0 0.0
    %118 = vmatpush1.msra.mxu0 0.0
    %119 = vmatprep.subr.mxu0 0.0
    %120 = vmatpush1.msra.mxu0 0.0
    %121 = vmatprep.subr.mxu0 0.0
    %122 = vmatpush1.msra.mxu0 0.0
    %123 = vmatprep.subr.mxu0 0.0
    %124 = vmatpush1.msra.mxu0 0.0
    %125 = vmatprep.subr.mxu0 0.0
    %126 = vmatpush1.msra.mxu0 0.0
    %127 = vmatprep.subr.mxu0 0.0
    %128 = vmatpush1.msra.mxu0 0.0
    %129 = vmatprep.subr.mxu0 0.0
    %130 = vmatpush1.msra.mxu0 0.0
    %131 = vmatprep.subr.mxu0 0.0
    %132 = vmatpush1.msra.mxu0 %v70
    %133 = vmatprep.subr.mxu0 0.0
    %134 = vmatpush1.msra.mxu0 %v69
    %135 = vmatprep.subr.mxu0 0.0
    %136 = vmatpush2.msra.mxu0 0.0
    %137 = vmatprep.subr.mxu0 0.0
    %138 = vmatpush2.msra.mxu0 0.0
    %139 = vmatprep.subr.mxu0 0.0
    %140 = vmatpush2.msra.mxu0 0.0
    %141 = vmatprep.subr.mxu0 0.0
    %142 = vmatpush2.msra.mxu0 0.0
    %143 = vmatprep.subr.mxu0 0.0
    %144 = vmatpush2.msra.mxu0 0.0
    %145 = vmatprep.subr.mxu0 0.0
    %146 = vmatpush2.msra.mxu0 0.0
    %147 = vmatprep.subr.mxu0 0.0
    %148 = vmatpush2.msra.mxu0 0.0
    %149 = vmatprep.subr.mxu0 0.0
    %150 = vmatpush2.msra.mxu0 0.0
    %151 = vmatprep.subr.mxu0 0.0
    %152 = vmatpush2.msra.mxu0 0.0
    %153 = vmatprep.subr.mxu0 0.0
    %154 = vmatpush2.msra.mxu0 0.0
    %155 = vmatprep.subr.mxu0 0.0
    %156 = vmatpush2.msra.mxu0 0.0
    %157 = vmatprep.subr.mxu0 0.0
    %158 = vmatpush2.msra.mxu0 0.0
    %159 = vmatprep.subr.mxu0 0.0
    %160 = vmatpush2.msra.mxu0 0.0
    %161 = vmatprep.subr.mxu0 0.0
    %162 = vmatpush2.msra.mxu0 0.0
    %163 = vmatprep.subr.mxu0 0.0
    %164 = vmatpush2.msra.mxu0 0.0
    %165 = vmatprep.subr.mxu0 0.0
    %166 = vmatpush2.msra.mxu0 0.0
    %167 = vmatprep.mubr.f32.mxu0 0.0
    %168 = vmatmul.mubr.f32.gmra.mxu0 %v80
    %v169 = vpop.f32.mrf.mxu0
    %v170 = vadd.f32 %v76, %v169
    %v171 = vpop.f32.mrf.mxu0
    %172 = vmatprep.mubr.f32.mxu0 0.0
    %173 = vmatmul.mubr.f32.gmra.mxu0 %v83
    %v174 = vpop.f32.mrf.mxu0
    %v175 = vadd.f32 %v76, %v174
    %v176 = vpop.f32.mrf.mxu0
    %177 = vmatprep.mubr.f32.mxu0 0.0
    %178 = vmatmul.mubr.f32.gmra.mxu0 %v86
    %v179 = vpop.f32.mrf.mxu0
    %v180 = vadd.f32 %v76, %v179
    %v181 = vpop.f32.mrf.mxu0
    %182 = vmatprep.mubr.f32.mxu0 0.0
    %183 = vmatmul.mubr.f32.gmra.mxu0 %v89
    %v184 = vpop.f32.mrf.mxu0
    %v185 = vadd.f32 %v76, %v184
    %v186 = vpop.f32.mrf.mxu0
    %187 = vmatprep.mubr.f32.mxu0 0.0
    %188 = vmatmul.mubr.f32.gmra.mxu0 %v92
    %v189 = vpop.f32.mrf.mxu0
    %v190 = vadd.f32 %v76, %v189
    %v191 = vpop.f32.mrf.mxu0
    %192 = vmatprep.mubr.f32.mxu0 0.0
    %193 = vmatmul.mubr.f32.gmra.mxu0 %v95
    %v194 = vpop.f32.mrf.mxu0
    %v195 = vadd.f32 %v76, %v194
    %v196 = vpop.f32.mrf.mxu0
    %197 = vmatprep.mubr.f32.mxu0 0.0
    %198 = vmatmul.mubr.f32.gmra.mxu0 %v98
    %v199 = vpop.f32.mrf.mxu0
    %v200 = vadd.f32 %v76, %v199
    %v201 = vpop.f32.mrf.mxu0
    %202 = vmatprep.mubr.f32.mxu0 0.0
    %203 = vmatmul.mubr.f32.gmra.mxu0 %v101
    %v204 = vpop.f32.mrf.mxu0
    %v205 = vadd.f32 %v76, %v204
    %v206 = vpop.f32.mrf.mxu0
    %207 = vdwg.mxu0
    %v208 = vld [vmem:[%s2] sm:$0xff]
    %v209 = vld [vmem:[%s2 + $0x8] sm:$0xff]
    %v210 = vld [vmem:[%s2 + $0x10] sm:$0xff]
    %v211 = vld [vmem:[%s2 + $0x18] sm:$0xff]
    %vm212 = vcmask 261120
    %v214 = vsel %vm212, 0.0, 0
    %216 = vmatprep.subr.mxu0 0.0
    %217 = vmatpush1.msra.mxu0 0.0
    %218 = vmatprep.subr.mxu0 0.0
    %219 = vmatpush1.msra.mxu0 0.0
    %220 = vmatprep.subr.mxu0 0.0
    %221 = vmatpush1.msra.mxu0 0.0
    %222 = vmatprep.subr.mxu0 0.0
    %223 = vmatpush1.msra.mxu0 0.0
    %224 = vmatprep.subr.mxu0 0.0
    %225 = vmatpush1.msra.mxu0 0.0
    %226 = vmatprep.subr.mxu0 0.0
    %227 = vmatpush1.msra.mxu0 0.0
    %228 = vmatprep.subr.mxu0 0.0
    %229 = vmatpush1.msra.mxu0 0.0
    %230 = vmatprep.subr.mxu0 0.0
    %231 = vmatpush1.msra.mxu0 0.0
    %232 = vmatprep.subr.mxu0 0.0
    %233 = vmatpush1.msra.mxu0 0.0
    %234 = vmatprep.subr.mxu0 0.0
    %235 = vmatpush1.msra.mxu0 0.0
    %236 = vmatprep.subr.mxu0 0.0
    %237 = vmatpush1.msra.mxu0 0.0
    %238 = vmatprep.subr.mxu0 0.0
    %239 = vmatpush1.msra.mxu0 0.0
    %240 = vmatprep.subr.mxu0 0.0
    %241 = vmatpush1.msra.mxu0 %v211
    %242 = vmatprep.subr.mxu0 0.0
    %243 = vmatpush1.msra.mxu0 %v210
    %244 = vmatprep.subr.mxu0 0.0
    %245 = vmatpush1.msra.mxu0 %v209
    %246 = vmatprep.subr.mxu0 0.0
    %247 = vmatpush1.msra.mxu0 %v208
    %248 = vmatprep.subr.mxu0 0.0
    %249 = vmatpush2.msra.mxu0 0.0
    %250 = vmatprep.subr.mxu0 0.0
    %251 = vmatpush2.msra.mxu0 0.0
    %252 = vmatprep.subr.mxu0 0.0
    %253 = vmatpush2.msra.mxu0 0.0
    %254 = vmatprep.subr.mxu0 0.0
    %255 = vmatpush2.msra.mxu0 0.0
    %256 = vmatprep.subr.mxu0 0.0
    %257 = vmatpush2.msra.mxu0 0.0
    %258 = vmatprep.subr.mxu0 0.0
    %259 = vmatpush2.msra.mxu0 0.0
    %260 = vmatprep.subr.mxu0 0.0
    %261 = vmatpush2.msra.mxu0 0.0
    %262 = vmatprep.subr.mxu0 0.0
    %263 = vmatpush2.msra.mxu0 0.0
    %264 = vmatprep.subr.mxu0 0.0
    %265 = vmatpush2.msra.mxu0 0.0
    %266 = vmatprep.subr.mxu0 0.0
    %267 = vmatpush2.msra.mxu0 0.0
    %268 = vmatprep.subr.mxu0 0.0
    %269 = vmatpush2.msra.mxu0 0.0
    %270 = vmatprep.subr.mxu0 0.0
    %271 = vmatpush2.msra.mxu0 0.0
    %272 = vmatprep.subr.mxu0 0.0
    %273 = vmatpush2.msra.mxu0 0.0
    %274 = vmatprep.subr.mxu0 0.0
    %275 = vmatpush2.msra.mxu0 0.0
    %276 = vmatprep.subr.mxu0 0.0
    %277 = vmatpush2.msra.mxu0 0.0
    %278 = vmatprep.subr.mxu0 0.0
    %279 = vmatpush2.msra.mxu0 0.0
    %280 = vmatprep.mubr.f32.mxu0 0.0
    %281 = vmatmul.mubr.f32.gmra.mxu0 %v214
    %v282 = vpop.f32.mrf.mxu0
    %v283 = vadd.f32 0.0, %v282
    %v284 = vpop.f32.mrf.mxu0
    %285 = vdwg.mxu0
    %v286 = vadd.f32 %v170, %v283
    %v287 = vxor.u32 %v286, 2147483648
    %v288 = vmul.f32 %v287, 1.442695
    %v289 = vpow.pop %v288
    %v290 = vadd.f32 %v289, 1.0
    %v291 = vrcp.pop %v290
    %v292 = vmul.f32 1.0, %v291
    %v293 = vtanh.pop %v286
    %v294 = vmul.f32 %v292, 0.0
    %296 = vrot.lane.b32.xlu0 %v293, 64
    %v297 = vpop.permute.xlu0 %296
    %v299 = vmul.f32 %v292, %v297
    %301 = vrot.lane.b32.xlu0 %v299, 32
    %v302 = vpop.permute.xlu0 %301
    %v304 = vadd.f32 %v294, %v302
    %v305 = vtanh.pop %v304
    %307 = vrot.lane.b32.xlu0 %v305, 64
    %v308 = vpop.permute.xlu0 %307
    %v310 = vmul.f32 %v292, %v308
    %312 = vrot.lane.b32.xlu0 %v310, 32
    %v313 = vpop.permute.xlu0 %312
    %315 = vst.msk [vmem:[#allocation2] sm:$0xff] %vm212, %v313
    %v316 = vld [vmem:[%s2] sm:$0xff]
    %v317 = vld [vmem:[%s2 + $0x8] sm:$0xff]
    %v318 = vld [vmem:[%s2 + $0x10] sm:$0xff]
    %v319 = vld [vmem:[%s2 + $0x18] sm:$0xff]
    %v320 = vsel %vm212, %v313, 0
    %322 = vmatprep.subr.mxu0 0.0
    %323 = vmatpush1.msra.mxu0 0.0
    %324 = vmatprep.subr.mxu0 0.0
    %325 = vmatpush1.msra.mxu0 0.0
    %326 = vmatprep.subr.mxu0 0.0
    %327 = vmatpush1.msra.mxu0 0.0
    %328 = vmatprep.subr.mxu0 0.0
    %329 = vmatpush1.msra.mxu0 0.0
    %330 = vmatprep.subr.mxu0 0.0
    %331 = vmatpush1.msra.mxu0 0.0
    %332 = vmatprep.subr.mxu0 0.0
    %333 = vmatpush1.msra.mxu0 0.0
    %334 = vmatprep.subr.mxu0 0.0
    %335 = vmatpush1.msra.mxu0 0.0
    %336 = vmatprep.subr.mxu0 0.0
    %337 = vmatpush1.msra.mxu0 0.0
    %338 = vmatprep.subr.mxu0 0.0
    %339 = vmatpush1.msra.mxu0 0.0
    %340 = vmatprep.subr.mxu0 0.0
    %341 = vmatpush1.msra.mxu0 0.0
    %342 = vmatprep.subr.mxu0 0.0
    %343 = vmatpush1.msra.mxu0 0.0
    %344 = vmatprep.subr.mxu0 0.0
    %345 = vmatpush1.msra.mxu0 0.0
    %346 = vmatprep.subr.mxu0 0.0
    %347 = vmatpush1.msra.mxu0 %v319
    %348 = vmatprep.subr.mxu0 0.0
    %349 = vmatpush1.msra.mxu0 %v318
    %350 = vmatprep.subr.mxu0 0.0
    %351 = vmatpush1.msra.mxu0 %v317
    %352 = vmatprep.subr.mxu0 0.0
    %353 = vmatpush1.msra.mxu0 %v316
    %354 = vmatprep.subr.mxu0 0.0
    %355 = vmatpush2.msra.mxu0 0.0
    %356 = vmatprep.subr.mxu0 0.0
    %357 = vmatpush2.msra.mxu0 0.0
    %358 = vmatprep.subr.mxu0 0.0
    %359 = vmatpush2.msra.mxu0 0.0
    %360 = vmatprep.subr.mxu0 0.0
    %361 = vmatpush2.msra.mxu0 0.0
    %362 = vmatprep.subr.mxu0 0.0
    %363 = vmatpush2.msra.mxu0 0.0
    %364 = vmatprep.subr.mxu0 0.0
    %365 = vmatpush2.msra.mxu0 0.0
    %366 = vmatprep.subr.mxu0 0.0
    %367 = vmatpush2.msra.mxu0 0.0
    %368 = vmatprep.subr.mxu0 0.0
    %369 = vmatpush2.msra.mxu0 0.0
    %370 = vmatprep.subr.mxu0 0.0
    %371 = vmatpush2.msra.mxu0 0.0
    %372 = vmatprep.subr.mxu0 0.0
    %373 = vmatpush2.msra.mxu0 0.0
    %374 = vmatprep.subr.mxu0 0.0
    %375 = vmatpush2.msra.mxu0 0.0
    %376 = vmatprep.subr.mxu0 0.0
    %377 = vmatpush2.msra.mxu0 0.0
    %378 = vmatprep.subr.mxu0 0.0
    %379 = vmatpush2.msra.mxu0 0.0
    %380 = vmatprep.subr.mxu0 0.0
    %381 = vmatpush2.msra.mxu0 0.0
    %382 = vmatprep.subr.mxu0 0.0
    %383 = vmatpush2.msra.mxu0 0.0
    %384 = vmatprep.subr.mxu0 0.0
    %385 = vmatpush2.msra.mxu0 0.0
    %386 = vmatprep.mubr.f32.mxu0 0.0
    %387 = vmatmul.mubr.f32.gmra.mxu0 %v320
    %v388 = vpop.f32.mrf.mxu0
    %v389 = vadd.f32 0.0, %v388
    %v390 = vpop.f32.mrf.mxu0
    %391 = vdwg.mxu0
    %v392 = vadd.f32 %v175, %v389
    %v393 = vxor.u32 %v392, 2147483648
    %v394 = vmul.f32 %v393, 1.442695
    %v395 = vpow.pop %v394
    %v396 = vadd.f32 %v395, 1.0
    %v397 = vrcp.pop %v396
    %v398 = vmul.f32 1.0, %v397
    %v399 = vtanh.pop %v392
    %v400 = vmul.f32 %v398, %v304
    %402 = vrot.lane.b32.xlu0 %v399, 64
    %v403 = vpop.permute.xlu0 %402
    %v405 = vmul.f32 %v398, %v403
    %407 = vrot.lane.b32.xlu0 %v405, 32
    %v408 = vpop.permute.xlu0 %407
    %v410 = vadd.f32 %v400, %v408
    %v411 = vtanh.pop %v410
    %413 = vrot.lane.b32.xlu0 %v411, 64
    %v414 = vpop.permute.xlu0 %413
    %v416 = vmul.f32 %v398, %v414
    %418 = vrot.lane.b32.xlu0 %v416, 32
    %v419 = vpop.permute.xlu0 %418
    %421 = vst.msk [vmem:[#allocation2 + $0x8] sm:$0xff] %vm212, %v419
    %v422 = vld [vmem:[%s2] sm:$0xff]
    %v423 = vld [vmem:[%s2 + $0x8] sm:$0xff]
    %v424 = vld [vmem:[%s2 + $0x10] sm:$0xff]
    %v425 = vld [vmem:[%s2 + $0x18] sm:$0xff]
    %v426 = vsel %vm212, %v419, 0
    %428 = vmatprep.subr.mxu0 0.0
    %429 = vmatpush1.msra.mxu0 0.0
    %430 = vmatprep.subr.mxu0 0.0
    %431 = vmatpush1.msra.mxu0 0.0
    %432 = vmatprep.subr.mxu0 0.0
    %433 = vmatpush1.msra.mxu0 0.0
    %434 = vmatprep.subr.mxu0 0.0
    %435 = vmatpush1.msra.mxu0 0.0
    %436 = vmatprep.subr.mxu0 0.0
    %437 = vmatpush1.msra.mxu0 0.0
    %438 = vmatprep.subr.mxu0 0.0
    %439 = vmatpush1.msra.mxu0 0.0
    %440 = vmatprep.subr.mxu0 0.0
    %441 = vmatpush1.msra.mxu0 0.0
    %442 = vmatprep.subr.mxu0 0.0
    %443 = vmatpush1.msra.mxu0 0.0
    %444 = vmatprep.subr.mxu0 0.0
    %445 = vmatpush1.msra.mxu0 0.0
    %446 = vmatprep.subr.mxu0 0.0
    %447 = vmatpush1.msra.mxu0 0.0
    %448 = vmatprep.subr.mxu0 0.0
    %449 = vmatpush1.msra.mxu0 0.0
    %450 = vmatprep.subr.mxu0 0.0
    %451 = vmatpush1.msra.mxu0 0.0
    %452 = vmatprep.subr.mxu0 0.0
    %453 = vmatpush1.msra.mxu0 %v425
    %454 = vmatprep.subr.mxu0 0.0
    %455 = vmatpush1.msra.mxu0 %v424
    %456 = vmatprep.subr.mxu0 0.0
    %457 = vmatpush1.msra.mxu0 %v423
    %458 = vmatprep.subr.mxu0 0.0
    %459 = vmatpush1.msra.mxu0 %v422
    %460 = vmatprep.subr.mxu0 0.0
    %461 = vmatpush2.msra.mxu0 0.0
    %462 = vmatprep.subr.mxu0 0.0
    %463 = vmatpush2.msra.mxu0 0.0
    %464 = vmatprep.subr.mxu0 0.0
    %465 = vmatpush2.msra.mxu0 0.0
    %466 = vmatprep.subr.mxu0 0.0
    %467 = vmatpush2.msra.mxu0 0.0
    %468 = vmatprep.subr.mxu0 0.0
    %469 = vmatpush2.msra.mxu0 0.0
    %470 = vmatprep.subr.mxu0 0.0
    %471 = vmatpush2.msra.mxu0 0.0
    %472 = vmatprep.subr.mxu0 0.0
    %473 = vmatpush2.msra.mxu0 0.0
    %474 = vmatprep.subr.mxu0 0.0
    %475 = vmatpush2.msra.mxu0 0.0
    %476 = vmatprep.subr.mxu0 0.0
    %477 = vmatpush2.msra.mxu0 0.0
    %478 = vmatprep.subr.mxu0 0.0
    %479 = vmatpush2.msra.mxu0 0.0
    %480 = vmatprep.subr.mxu0 0.0
    %481 = vmatpush2.msra.mxu0 0.0
    %482 = vmatprep.subr.mxu0 0.0
    %483 = vmatpush2.msra.mxu0 0.0
    %484 = vmatprep.subr.mxu0 0.0
    %485 = vmatpush2.msra.mxu0 0.0
    %486 = vmatprep.subr.mxu0 0.0
    %487 = vmatpush2.msra.mxu0 0.0
    %488 = vmatprep.subr.mxu0 0.0
    %489 = vmatpush2.msra.mxu0 0.0
    %490 = vmatprep.subr.mxu0 0.0
    %491 = vmatpush2.msra.mxu0 0.0
    %492 = vmatprep.mubr.f32.mxu0 0.0
    %493 = vmatmul.mubr.f32.gmra.mxu0 %v426
    %v494 = vpop.f32.mrf.mxu0
    %v495 = vadd.f32 0.0, %v494
    %v496 = vpop.f32.mrf.mxu0
    %497 = vdwg.mxu0
    %v498 = vadd.f32 %v180, %v495
    %v499 = vxor.u32 %v498, 2147483648
    %v500 = vmul.f32 %v499, 1.442695
    %v501 = vpow.pop %v500
    %v502 = vadd.f32 %v501, 1.0
    %v503 = vrcp.pop %v502
    %v504 = vmul.f32 1.0, %v503
    %v505 = vtanh.pop %v498
    %v506 = vmul.f32 %v504, %v410
    %508 = vrot.lane.b32.xlu0 %v505, 64
    %v509 = vpop.permute.xlu0 %508
    %v511 = vmul.f32 %v504, %v509
    %513 = vrot.lane.b32.xlu0 %v511, 32
    %v514 = vpop.permute.xlu0 %513
    %v516 = vadd.f32 %v506, %v514
    %v517 = vtanh.pop %v516
    %519 = vrot.lane.b32.xlu0 %v517, 64
    %v520 = vpop.permute.xlu0 %519
    %v522 = vmul.f32 %v504, %v520
    %524 = vrot.lane.b32.xlu0 %v522, 32
    %v525 = vpop.permute.xlu0 %524
    %527 = vst.msk [vmem:[#allocation2 + $0x10] sm:$0xff] %vm212, %v525
    %v528 = vld [vmem:[%s2] sm:$0xff]
    %v529 = vld [vmem:[%s2 + $0x8] sm:$0xff]
    %v530 = vld [vmem:[%s2 + $0x10] sm:$0xff]
    %v531 = vld [vmem:[%s2 + $0x18] sm:$0xff]
    %v532 = vsel %vm212, %v525, 0
    %534 = vmatprep.subr.mxu0 0.0
    %535 = vmatpush1.msra.mxu0 0.0
    %536 = vmatprep.subr.mxu0 0.0
    %537 = vmatpush1.msra.mxu0 0.0
    %538 = vmatprep.subr.mxu0 0.0
    %539 = vmatpush1.msra.mxu0 0.0
    %540 = vmatprep.subr.mxu0 0.0
    %541 = vmatpush1.msra.mxu0 0.0
    %542 = vmatprep.subr.mxu0 0.0
    %543 = vmatpush1.msra.mxu0 0.0
    %544 = vmatprep.subr.mxu0 0.0
    %545 = vmatpush1.msra.mxu0 0.0
    %546 = vmatprep.subr.mxu0 0.0
    %547 = vmatpush1.msra.mxu0 0.0
    %548 = vmatprep.subr.mxu0 0.0
    %549 = vmatpush1.msra.mxu0 0.0
    %550 = vmatprep.subr.mxu0 0.0
    %551 = vmatpush1.msra.mxu0 0.0
    %552 = vmatprep.subr.mxu0 0.0
    %553 = vmatpush1.msra.mxu0 0.0
    %554 = vmatprep.subr.mxu0 0.0
    %555 = vmatpush1.msra.mxu0 0.0
    %556 = vmatprep.subr.mxu0 0.0
    %557 = vmatpush1.msra.mxu0 0.0
    %558 = vmatprep.subr.mxu0 0.0
    %559 = vmatpush1.msra.mxu0 %v531
    %560 = vmatprep.subr.mxu0 0.0
    %561 = vmatpush1.msra.mxu0 %v530
    %562 = vmatprep.subr.mxu0 0.0
    %563 = vmatpush1.msra.mxu0 %v529
    %564 = vmatprep.subr.mxu0 0.0
    %565 = vmatpush1.msra.mxu0 %v528
    %566 = vmatprep.subr.mxu0 0.0
    %567 = vmatpush2.msra.mxu0 0.0
    %568 = vmatprep.subr.mxu0 0.0
    %569 = vmatpush2.msra.mxu0 0.0
    %570 = vmatprep.subr.mxu0 0.0
    %571 = vmatpush2.msra.mxu0 0.0
    %572 = vmatprep.subr.mxu0 0.0
    %573 = vmatpush2.msra.mxu0 0.0
    %574 = vmatprep.subr.mxu0 0.0
    %575 = vmatpush2.msra.mxu0 0.0
    %576 = vmatprep.subr.mxu0 0.0
    %577 = vmatpush2.msra.mxu0 0.0
    %578 = vmatprep.subr.mxu0 0.0
    %579 = vmatpush2.msra.mxu0 0.0
    %580 = vmatprep.subr.mxu0 0.0
    %581 = vmatpush2.msra.mxu0 0.0
    %582 = vmatprep.subr.mxu0 0.0
    %583 = vmatpush2.msra.mxu0 0.0
    %584 = vmatprep.subr.mxu0 0.0
    %585 = vmatpush2.msra.mxu0 0.0
    %586 = vmatprep.subr.mxu0 0.0
    %587 = vmatpush2.msra.mxu0 0.0
    %588 = vmatprep.subr.mxu0 0.0
    %589 = vmatpush2.msra.mxu0 0.0
    %590 = vmatprep.subr.mxu0 0.0
    %591 = vmatpush2.msra.mxu0 0.0
    %592 = vmatprep.subr.mxu0 0.0
    %593 = vmatpush2.msra.mxu0 0.0
    %594 = vmatprep.subr.mxu0 0.0
    %595 = vmatpush2.msra.mxu0 0.0
    %596 = vmatprep.subr.mxu0 0.0
    %597 = vmatpush2.msra.mxu0 0.0
    %598 = vmatprep.mubr.f32.mxu0 0.0
    %599 = vmatmul.mubr.f32.gmra.mxu0 %v532
    %v600 = vpop.f32.mrf.mxu0
    %v601 = vadd.f32 0.0, %v600
    %v602 = vpop.f32.mrf.mxu0
    %603 = vdwg.mxu0
    %v604 = vadd.f32 %v185, %v601
    %v605 = vxor.u32 %v604, 2147483648
    %v606 = vmul.f32 %v605, 1.442695
    %v607 = vpow.pop %v606
    %v608 = vadd.f32 %v607, 1.0
    %v609 = vrcp.pop %v608
    %v610 = vmul.f32 1.0, %v609
    %v611 = vtanh.pop %v604
    %v612 = vmul.f32 %v610, %v516
    %614 = vrot.lane.b32.xlu0 %v611, 64
    %v615 = vpop.permute.xlu0 %614
    %v617 = vmul.f32 %v610, %v615
    %619 = vrot.lane.b32.xlu0 %v617, 32
    %v620 = vpop.permute.xlu0 %619
    %v622 = vadd.f32 %v612, %v620
    %v623 = vtanh.pop %v622
    %625 = vrot.lane.b32.xlu0 %v623, 64
    %v626 = vpop.permute.xlu0 %625
    %v628 = vmul.f32 %v610, %v626
    %630 = vrot.lane.b32.xlu0 %v628, 32
    %v631 = vpop.permute.xlu0 %630
    %633 = vst.msk [vmem:[#allocation2 + $0x18] sm:$0xff] %vm212, %v631
    %v634 = vld [vmem:[%s2] sm:$0xff]
    %v635 = vld [vmem:[%s2 + $0x8] sm:$0xff]
    %v636 = vld [vmem:[%s2 + $0x10] sm:$0xff]
    %v637 = vld [vmem:[%s2 + $0x18] sm:$0xff]
    %v638 = vsel %vm212, %v631, 0
    %640 = vmatprep.subr.mxu0 0.0
    %641 = vmatpush1.msra.mxu0 0.0
    %642 = vmatprep.subr.mxu0 0.0
    %643 = vmatpush1.msra.mxu0 0.0
    %644 = vmatprep.subr.mxu0 0.0
    %645 = vmatpush1.msra.mxu0 0.0
    %646 = vmatprep.subr.mxu0 0.0
    %647 = vmatpush1.msra.mxu0 0.0
    %648 = vmatprep.subr.mxu0 0.0
    %649 = vmatpush1.msra.mxu0 0.0
    %650 = vmatprep.subr.mxu0 0.0
    %651 = vmatpush1.msra.mxu0 0.0
    %652 = vmatprep.subr.mxu0 0.0
    %653 = vmatpush1.msra.mxu0 0.0
    %654 = vmatprep.subr.mxu0 0.0
    %655 = vmatpush1.msra.mxu0 0.0
    %656 = vmatprep.subr.mxu0 0.0
    %657 = vmatpush1.msra.mxu0 0.0
    %658 = vmatprep.subr.mxu0 0.0
    %659 = vmatpush1.msra.mxu0 0.0
    %660 = vmatprep.subr.mxu0 0.0
    %661 = vmatpush1.msra.mxu0 0.0
    %662 = vmatprep.subr.mxu0 0.0
    %663 = vmatpush1.msra.mxu0 0.0
    %664 = vmatprep.subr.mxu0 0.0
    %665 = vmatpush1.msra.mxu0 %v637
    %666 = vmatprep.subr.mxu0 0.0
    %667 = vmatpush1.msra.mxu0 %v636
    %668 = vmatprep.subr.mxu0 0.0
    %669 = vmatpush1.msra.mxu0 %v635
    %670 = vmatprep.subr.mxu0 0.0
    %671 = vmatpush1.msra.mxu0 %v634
    %672 = vmatprep.subr.mxu0 0.0
    %673 = vmatpush2.msra.mxu0 0.0
    %674 = vmatprep.subr.mxu0 0.0
    %675 = vmatpush2.msra.mxu0 0.0
    %676 = vmatprep.subr.mxu0 0.0
    %677 = vmatpush2.msra.mxu0 0.0
    %678 = vmatprep.subr.mxu0 0.0
    %679 = vmatpush2.msra.mxu0 0.0
    %680 = vmatprep.subr.mxu0 0.0
    %681 = vmatpush2.msra.mxu0 0.0
    %682 = vmatprep.subr.mxu0 0.0
    %683 = vmatpush2.msra.mxu0 0.0
    %684 = vmatprep.subr.mxu0 0.0
    %685 = vmatpush2.msra.mxu0 0.0
    %686 = vmatprep.subr.mxu0 0.0
    %687 = vmatpush2.msra.mxu0 0.0
    %688 = vmatprep.subr.mxu0 0.0
    %689 = vmatpush2.msra.mxu0 0.0
    %690 = vmatprep.subr.mxu0 0.0
    %691 = vmatpush2.msra.mxu0 0.0
    %692 = vmatprep.subr.mxu0 0.0
    %693 = vmatpush2.msra.mxu0 0.0
    %694 = vmatprep.subr.mxu0 0.0
    %695 = vmatpush2.msra.mxu0 0.0
    %696 = vmatprep.subr.mxu0 0.0
    %697 = vmatpush2.msra.mxu0 0.0
    %698 = vmatprep.subr.mxu0 0.0
    %699 = vmatpush2.msra.mxu0 0.0
    %700 = vmatprep.subr.mxu0 0.0
    %701 = vmatpush2.msra.mxu0 0.0
    %702 = vmatprep.subr.mxu0 0.0
    %703 = vmatpush2.msra.mxu0 0.0
    %704 = vmatprep.mubr.f32.mxu0 0.0
    %705 = vmatmul.mubr.f32.gmra.mxu0 %v638
    %v706 = vpop.f32.mrf.mxu0
    %v707 = vadd.f32 0.0, %v706
    %v708 = vpop.f32.mrf.mxu0
    %709 = vdwg.mxu0
    %v710 = vadd.f32 %v190, %v707
    %v711 = vxor.u32 %v710, 2147483648
    %v712 = vmul.f32 %v711, 1.442695
    %v713 = vpow.pop %v712
    %v714 = vadd.f32 %v713, 1.0
    %v715 = vrcp.pop %v714
    %v716 = vmul.f32 1.0, %v715
    %v717 = vtanh.pop %v710
    %v718 = vmul.f32 %v716, %v622
    %720 = vrot.lane.b32.xlu0 %v717, 64
    %v721 = vpop.permute.xlu0 %720
    %v723 = vmul.f32 %v716, %v721
    %725 = vrot.lane.b32.xlu0 %v723, 32
    %v726 = vpop.permute.xlu0 %725
    %v728 = vadd.f32 %v718, %v726
    %v729 = vtanh.pop %v728
    %731 = vrot.lane.b32.xlu0 %v729, 64
    %v732 = vpop.permute.xlu0 %731
    %v734 = vmul.f32 %v716, %v732
    %736 = vrot.lane.b32.xlu0 %v734, 32
    %v737 = vpop.permute.xlu0 %736
    %739 = vst.msk [vmem:[#allocation2 + $0x20] sm:$0xff] %vm212, %v737
    %v740 = vld [vmem:[%s2] sm:$0xff]
    %v741 = vld [vmem:[%s2 + $0x8] sm:$0xff]
    %v742 = vld [vmem:[%s2 + $0x10] sm:$0xff]
    %v743 = vld [vmem:[%s2 + $0x18] sm:$0xff]
    %v744 = vsel %vm212, %v737, 0
    %746 = vmatprep.subr.mxu0 0.0
    %747 = vmatpush1.msra.mxu0 0.0
    %748 = vmatprep.subr.mxu0 0.0
    %749 = vmatpush1.msra.mxu0 0.0
    %750 = vmatprep.subr.mxu0 0.0
    %751 = vmatpush1.msra.mxu0 0.0
    %752 = vmatprep.subr.mxu0 0.0
    %753 = vmatpush1.msra.mxu0 0.0
    %754 = vmatprep.subr.mxu0 0.0
    %755 = vmatpush1.msra.mxu0 0.0
    %756 = vmatprep.subr.mxu0 0.0
    %757 = vmatpush1.msra.mxu0 0.0
    %758 = vmatprep.subr.mxu0 0.0
    %759 = vmatpush1.msra.mxu0 0.0
    %760 = vmatprep.subr.mxu0 0.0
    %761 = vmatpush1.msra.mxu0 0.0
    %762 = vmatprep.subr.mxu0 0.0
    %763 = vmatpush1.msra.mxu0 0.0
    %764 = vmatprep.subr.mxu0 0.0
    %765 = vmatpush1.msra.mxu0 0.0
    %766 = vmatprep.subr.mxu0 0.0
    %767 = vmatpush1.msra.mxu0 0.0
    %768 = vmatprep.subr.mxu0 0.0
    %769 = vmatpush1.msra.mxu0 0.0
    %770 = vmatprep.subr.mxu0 0.0
    %771 = vmatpush1.msra.mxu0 %v743
    %772 = vmatprep.subr.mxu0 0.0
    %773 = vmatpush1.msra.mxu0 %v742
    %774 = vmatprep.subr.mxu0 0.0
    %775 = vmatpush1.msra.mxu0 %v741
    %776 = vmatprep.subr.mxu0 0.0
    %777 = vmatpush1.msra.mxu0 %v740
    %778 = vmatprep.subr.mxu0 0.0
    %779 = vmatpush2.msra.mxu0 0.0
    %780 = vmatprep.subr.mxu0 0.0
    %781 = vmatpush2.msra.mxu0 0.0
    %782 = vmatprep.subr.mxu0 0.0
    %783 = vmatpush2.msra.mxu0 0.0
    %784 = vmatprep.subr.mxu0 0.0
    %785 = vmatpush2.msra.mxu0 0.0
    %786 = vmatprep.subr.mxu0 0.0
    %787 = vmatpush2.msra.mxu0 0.0
    %788 = vmatprep.subr.mxu0 0.0
    %789 = vmatpush2.msra.mxu0 0.0
    %790 = vmatprep.subr.mxu0 0.0
    %791 = vmatpush2.msra.mxu0 0.0
    %792 = vmatprep.subr.mxu0 0.0
    %793 = vmatpush2.msra.mxu0 0.0
    %794 = vmatprep.subr.mxu0 0.0
    %795 = vmatpush2.msra.mxu0 0.0
    %796 = vmatprep.subr.mxu0 0.0
    %797 = vmatpush2.msra.mxu0 0.0
    %798 = vmatprep.subr.mxu0 0.0
    %799 = vmatpush2.msra.mxu0 0.0
    %800 = vmatprep.subr.mxu0 0.0
    %801 = vmatpush2.msra.mxu0 0.0
    %802 = vmatprep.subr.mxu0 0.0
    %803 = vmatpush2.msra.mxu0 0.0
    %804 = vmatprep.subr.mxu0 0.0
    %805 = vmatpush2.msra.mxu0 0.0
    %806 = vmatprep.subr.mxu0 0.0
    %807 = vmatpush2.msra.mxu0 0.0
    %808 = vmatprep.subr.mxu0 0.0
    %809 = vmatpush2.msra.mxu0 0.0
    %810 = vmatprep.mubr.f32.mxu0 0.0
    %811 = vmatmul.mubr.f32.gmra.mxu0 %v744
    %v812 = vpop.f32.mrf.mxu0
    %v813 = vadd.f32 0.0, %v812
    %v814 = vpop.f32.mrf.mxu0
    %815 = vdwg.mxu0
    %v816 = vadd.f32 %v195, %v813
    %v817 = vxor.u32 %v816, 2147483648
    %v818 = vmul.f32 %v817, 1.442695
    %v819 = vpow.pop %v818
    %v820 = vadd.f32 %v819, 1.0
    %v821 = vrcp.pop %v820
    %v822 = vmul.f32 1.0, %v821
    %v823 = vtanh.pop %v816
    %v824 = vmul.f32 %v822, %v728
    %826 = vrot.lane.b32.xlu0 %v823, 64
    %v827 = vpop.permute.xlu0 %826
    %v829 = vmul.f32 %v822, %v827
    %831 = vrot.lane.b32.xlu0 %v829, 32
    %v832 = vpop.permute.xlu0 %831
    %v834 = vadd.f32 %v824, %v832
    %v835 = vtanh.pop %v834
    %837 = vrot.lane.b32.xlu0 %v835, 64
    %v838 = vpop.permute.xlu0 %837
    %v840 = vmul.f32 %v822, %v838
    %842 = vrot.lane.b32.xlu0 %v840, 32
    %v843 = vpop.permute.xlu0 %842
    %845 = vst.msk [vmem:[#allocation2 + $0x28] sm:$0xff] %vm212, %v843
    %v846 = vld [vmem:[%s2] sm:$0xff]
    %v847 = vld [vmem:[%s2 + $0x8] sm:$0xff]
    %v848 = vld [vmem:[%s2 + $0x10] sm:$0xff]
    %v849 = vld [vmem:[%s2 + $0x18] sm:$0xff]
    %v850 = vsel %vm212, %v843, 0
    %852 = vmatprep.subr.mxu0 0.0
    %853 = vmatpush1.msra.mxu0 0.0
    %854 = vmatprep.subr.mxu0 0.0
    %855 = vmatpush1.msra.mxu0 0.0
    %856 = vmatprep.subr.mxu0 0.0
    %857 = vmatpush1.msra.mxu0 0.0
    %858 = vmatprep.subr.mxu0 0.0
    %859 = vmatpush1.msra.mxu0 0.0
    %860 = vmatprep.subr.mxu0 0.0
    %861 = vmatpush1.msra.mxu0 0.0
    %862 = vmatprep.subr.mxu0 0.0
    %863 = vmatpush1.msra.mxu0 0.0
    %864 = vmatprep.subr.mxu0 0.0
    %865 = vmatpush1.msra.mxu0 0.0
    %866 = vmatprep.subr.mxu0 0.0
    %867 = vmatpush1.msra.mxu0 0.0
    %868 = vmatprep.subr.mxu0 0.0
    %869 = vmatpush1.msra.mxu0 0.0
    %870 = vmatprep.subr.mxu0 0.0
    %871 = vmatpush1.msra.mxu0 0.0
    %872 = vmatprep.subr.mxu0 0.0
    %873 = vmatpush1.msra.mxu0 0.0
    %874 = vmatprep.subr.mxu0 0.0
    %875 = vmatpush1.msra.mxu0 0.0
    %876 = vmatprep.subr.mxu0 0.0
    %877 = vmatpush1.msra.mxu0 %v849
    %878 = vmatprep.subr.mxu0 0.0
    %879 = vmatpush1.msra.mxu0 %v848
    %880 = vmatprep.subr.mxu0 0.0
    %881 = vmatpush1.msra.mxu0 %v847
    %882 = vmatprep.subr.mxu0 0.0
    %883 = vmatpush1.msra.mxu0 %v846
    %884 = vmatprep.subr.mxu0 0.0
    %885 = vmatpush2.msra.mxu0 0.0
    %886 = vmatprep.subr.mxu0 0.0
    %887 = vmatpush2.msra.mxu0 0.0
    %888 = vmatprep.subr.mxu0 0.0
    %889 = vmatpush2.msra.mxu0 0.0
    %890 = vmatprep.subr.mxu0 0.0
    %891 = vmatpush2.msra.mxu0 0.0
    %892 = vmatprep.subr.mxu0 0.0
    %893 = vmatpush2.msra.mxu0 0.0
    %894 = vmatprep.subr.mxu0 0.0
    %895 = vmatpush2.msra.mxu0 0.0
    %896 = vmatprep.subr.mxu0 0.0
    %897 = vmatpush2.msra.mxu0 0.0
    %898 = vmatprep.subr.mxu0 0.0
    %899 = vmatpush2.msra.mxu0 0.0
    %900 = vmatprep.subr.mxu0 0.0
    %901 = vmatpush2.msra.mxu0 0.0
    %902 = vmatprep.subr.mxu0 0.0
    %903 = vmatpush2.msra.mxu0 0.0
    %904 = vmatprep.subr.mxu0 0.0
    %905 = vmatpush2.msra.mxu0 0.0
    %906 = vmatprep.subr.mxu0 0.0
    %907 = vmatpush2.msra.mxu0 0.0
    %908 = vmatprep.subr.mxu0 0.0
    %909 = vmatpush2.msra.mxu0 0.0
    %910 = vmatprep.subr.mxu0 0.0
    %911 = vmatpush2.msra.mxu0 0.0
    %912 = vmatprep.subr.mxu0 0.0
    %913 = vmatpush2.msra.mxu0 0.0
    %914 = vmatprep.subr.mxu0 0.0
    %915 = vmatpush2.msra.mxu0 0.0
    %916 = vmatprep.mubr.f32.mxu0 0.0
    %917 = vmatmul.mubr.f32.gmra.mxu0 %v850
    %v918 = vpop.f32.mrf.mxu0
    %v919 = vadd.f32 0.0, %v918
    %v920 = vpop.f32.mrf.mxu0
    %921 = vdwg.mxu0
    %v922 = vadd.f32 %v200, %v919
    %v923 = vxor.u32 %v922, 2147483648
    %v924 = vmul.f32 %v923, 1.442695
    %v925 = vpow.pop %v924
    %v926 = vadd.f32 %v925, 1.0
    %v927 = vrcp.pop %v926
    %v928 = vmul.f32 1.0, %v927
    %v929 = vtanh.pop %v922
    %v930 = vmul.f32 %v928, %v834
    %932 = vrot.lane.b32.xlu0 %v929, 64
    %v933 = vpop.permute.xlu0 %932
    %v935 = vmul.f32 %v928, %v933
    %937 = vrot.lane.b32.xlu0 %v935, 32
    %v938 = vpop.permute.xlu0 %937
    %v940 = vadd.f32 %v930, %v938
    %v941 = vtanh.pop %v940
    %943 = vrot.lane.b32.xlu0 %v941, 64
    %v944 = vpop.permute.xlu0 %943
    %v946 = vmul.f32 %v928, %v944
    %948 = vrot.lane.b32.xlu0 %v946, 32
    %v949 = vpop.permute.xlu0 %948
    %951 = vst.msk [vmem:[#allocation2 + $0x30] sm:$0xff] %vm212, %v949
    %v952 = vld [vmem:[%s2] sm:$0xff]
    %v953 = vld [vmem:[%s2 + $0x8] sm:$0xff]
    %v954 = vld [vmem:[%s2 + $0x10] sm:$0xff]
    %v955 = vld [vmem:[%s2 + $0x18] sm:$0xff]
    %v956 = vsel %vm212, %v949, 0
    %958 = vmatprep.subr.mxu0 0.0
    %959 = vmatpush1.msra.mxu0 0.0
    %960 = vmatprep.subr.mxu0 0.0
    %961 = vmatpush1.msra.mxu0 0.0
    %962 = vmatprep.subr.mxu0 0.0
    %963 = vmatpush1.msra.mxu0 0.0
    %964 = vmatprep.subr.mxu0 0.0
    %965 = vmatpush1.msra.mxu0 0.0
    %966 = vmatprep.subr.mxu0 0.0
    %967 = vmatpush1.msra.mxu0 0.0
    %968 = vmatprep.subr.mxu0 0.0
    %969 = vmatpush1.msra.mxu0 0.0
    %970 = vmatprep.subr.mxu0 0.0
    %971 = vmatpush1.msra.mxu0 0.0
    %972 = vmatprep.subr.mxu0 0.0
    %973 = vmatpush1.msra.mxu0 0.0
    %974 = vmatprep.subr.mxu0 0.0
    %975 = vmatpush1.msra.mxu0 0.0
    %976 = vmatprep.subr.mxu0 0.0
    %977 = vmatpush1.msra.mxu0 0.0
    %978 = vmatprep.subr.mxu0 0.0
    %979 = vmatpush1.msra.mxu0 0.0
    %980 = vmatprep.subr.mxu0 0.0
    %981 = vmatpush1.msra.mxu0 0.0
    %982 = vmatprep.subr.mxu0 0.0
    %983 = vmatpush1.msra.mxu0 %v955
    %984 = vmatprep.subr.mxu0 0.0
    %985 = vmatpush1.msra.mxu0 %v954
    %986 = vmatprep.subr.mxu0 0.0
    %987 = vmatpush1.msra.mxu0 %v953
    %988 = vmatprep.subr.mxu0 0.0
    %989 = vmatpush1.msra.mxu0 %v952
    %990 = vmatprep.subr.mxu0 0.0
    %991 = vmatpush2.msra.mxu0 0.0
    %992 = vmatprep.subr.mxu0 0.0
    %993 = vmatpush2.msra.mxu0 0.0
    %994 = vmatprep.subr.mxu0 0.0
    %995 = vmatpush2.msra.mxu0 0.0
    %996 = vmatprep.subr.mxu0 0.0
    %997 = vmatpush2.msra.mxu0 0.0
    %998 = vmatprep.subr.mxu0 0.0
    %999 = vmatpush2.msra.mxu0 0.0
    %1000 = vmatprep.subr.mxu0 0.0
    %1001 = vmatpush2.msra.mxu0 0.0
    %1002 = vmatprep.subr.mxu0 0.0
    %1003 = vmatpush2.msra.mxu0 0.0
    %1004 = vmatprep.subr.mxu0 0.0
    %1005 = vmatpush2.msra.mxu0 0.0
    %1006 = vmatprep.subr.mxu0 0.0
    %1007 = vmatpush2.msra.mxu0 0.0
    %1008 = vmatprep.subr.mxu0 0.0
    %1009 = vmatpush2.msra.mxu0 0.0
    %1010 = vmatprep.subr.mxu0 0.0
    %1011 = vmatpush2.msra.mxu0 0.0
    %1012 = vmatprep.subr.mxu0 0.0
    %1013 = vmatpush2.msra.mxu0 0.0
    %1014 = vmatprep.subr.mxu0 0.0
    %1015 = vmatpush2.msra.mxu0 0.0
    %1016 = vmatprep.subr.mxu0 0.0
    %1017 = vmatpush2.msra.mxu0 0.0
    %1018 = vmatprep.subr.mxu0 0.0
    %1019 = vmatpush2.msra.mxu0 0.0
    %1020 = vmatprep.subr.mxu0 0.0
    %1021 = vmatpush2.msra.mxu0 0.0
    %1022 = vmatprep.mubr.f32.mxu0 0.0
    %1023 = vmatmul.mubr.f32.gmra.mxu0 %v956
    %v1024 = vpop.f32.mrf.mxu0
    %v1025 = vadd.f32 0.0, %v1024
    %v1026 = vpop.f32.mrf.mxu0
    %1027 = vdwg.mxu0
    %v1028 = vadd.f32 %v205, %v1025
    %v1029 = vxor.u32 %v1028, 2147483648
    %v1030 = vmul.f32 %v1029, 1.442695
    %v1031 = vpow.pop %v1030
    %v1032 = vadd.f32 %v1031, 1.0
    %v1033 = vrcp.pop %v1032
    %v1034 = vmul.f32 1.0, %v1033
    %v1035 = vtanh.pop %v1028
    %v1036 = vmul.f32 %v1034, %v940
    %1038 = vrot.lane.b32.xlu0 %v1035, 64
    %v1039 = vpop.permute.xlu0 %1038
    %v1041 = vmul.f32 %v1034, %v1039
    %1043 = vrot.lane.b32.xlu0 %v1041, 32
    %v1044 = vpop.permute.xlu0 %1043
    %v1046 = vadd.f32 %v1036, %v1044
    %v1047 = vtanh.pop %v1046
    %1049 = vrot.lane.b32.xlu0 %v1047, 64
    %v1050 = vpop.permute.xlu0 %1049
    %v1052 = vmul.f32 %v1034, %v1050
    %1054 = vrot.lane.b32.xlu0 %v1052, 32
    %v1055 = vpop.permute.xlu0 %1054
    %1057 = vst.msk [vmem:[#allocation2 + $0x38] sm:$0xff] %vm212, %v1055
    %v1058 = vld [vmem:[#allocation2] sm:$0xff]
    %v1059 = vld [vmem:[#allocation2 + $0x8] sm:$0xff]
    %v1060 = vld [vmem:[#allocation2 + $0x10] sm:$0xff]
    %v1061 = vld [vmem:[#allocation2 + $0x18] sm:$0xff]
    %v1062 = vld [vmem:[#allocation2 + $0x20] sm:$0xff]
    %v1063 = vld [vmem:[#allocation2 + $0x28] sm:$0xff]
    %v1064 = vld [vmem:[#allocation2 + $0x30] sm:$0xff]
    %v1065 = vld [vmem:[#allocation2 + $0x38] sm:$0xff]
    %v1066 = vld [vmem:[%s4] sm:$0xff]
    %v1067 = vld [vmem:[%s4 + $0x8] sm:$0xff]
    %v1068 = vld [vmem:[%s4 + $0x10] sm:$0xff]
    %v1069 = vld [vmem:[%s4 + $0x18] sm:$0xff]
    %v1070 = vld [vmem:[%s6] sm:$0x1]
    %v1072 = vlaneseq
    %v1073 = vshrl.u32 %v1072, 7
    %v1074 = vsub.s32 0, %v1073
    %v1075 = vrot.slane %v1070, %v1074
    %v1078 = vsel %vm212, %v1058, 0
    %v1081 = vsel %vm212, %v1059, 0
    %v1084 = vsel %vm212, %v1060, 0
    %v1087 = vsel %vm212, %v1061, 0
    %v1090 = vsel %vm212, %v1062, 0
    %v1093 = vsel %vm212, %v1063, 0
    %v1096 = vsel %vm212, %v1064, 0
    %v1099 = vsel %vm212, %v1065, 0
    %1101 = vmatprep.subr.mxu0 0.0
    %1102 = vmatpush1.msra.mxu0 0.0
    %1103 = vmatprep.subr.mxu0 0.0
    %1104 = vmatpush1.msra.mxu0 0.0
    %1105 = vmatprep.subr.mxu0 0.0
    %1106 = vmatpush1.msra.mxu0 0.0
    %1107 = vmatprep.subr.mxu0 0.0
    %1108 = vmatpush1.msra.mxu0 0.0
    %1109 = vmatprep.subr.mxu0 0.0
    %1110 = vmatpush1.msra.mxu0 0.0
    %1111 = vmatprep.subr.mxu0 0.0
    %1112 = vmatpush1.msra.mxu0 0.0
    %1113 = vmatprep.subr.mxu0 0.0
    %1114 = vmatpush1.msra.mxu0 0.0
    %1115 = vmatprep.subr.mxu0 0.0
    %1116 = vmatpush1.msra.mxu0 0.0
    %1117 = vmatprep.subr.mxu0 0.0
    %1118 = vmatpush1.msra.mxu0 0.0
    %1119 = vmatprep.subr.mxu0 0.0
    %1120 = vmatpush1.msra.mxu0 0.0
    %1121 = vmatprep.subr.mxu0 0.0
    %1122 = vmatpush1.msra.mxu0 0.0
    %1123 = vmatprep.subr.mxu0 0.0
    %1124 = vmatpush1.msra.mxu0 0.0
    %1125 = vmatprep.subr.mxu0 0.0
    %1126 = vmatpush1.msra.mxu0 %v1069
    %1127 = vmatprep.subr.mxu0 0.0
    %1128 = vmatpush1.msra.mxu0 %v1068
    %1129 = vmatprep.subr.mxu0 0.0
    %1130 = vmatpush1.msra.mxu0 %v1067
    %1131 = vmatprep.subr.mxu0 0.0
    %1132 = vmatpush1.msra.mxu0 %v1066
    %1133 = vmatprep.subr.mxu0 0.0
    %1134 = vmatpush2.msra.mxu0 0.0
    %1135 = vmatprep.subr.mxu0 0.0
    %1136 = vmatpush2.msra.mxu0 0.0
    %1137 = vmatprep.subr.mxu0 0.0
    %1138 = vmatpush2.msra.mxu0 0.0
    %1139 = vmatprep.subr.mxu0 0.0
    %1140 = vmatpush2.msra.mxu0 0.0
    %1141 = vmatprep.subr.mxu0 0.0
    %1142 = vmatpush2.msra.mxu0 0.0
    %1143 = vmatprep.subr.mxu0 0.0
    %1144 = vmatpush2.msra.mxu0 0.0
    %1145 = vmatprep.subr.mxu0 0.0
    %1146 = vmatpush2.msra.mxu0 0.0
    %1147 = vmatprep.subr.mxu0 0.0
    %1148 = vmatpush2.msra.mxu0 0.0
    %1149 = vmatprep.subr.mxu0 0.0
    %1150 = vmatpush2.msra.mxu0 0.0
    %1151 = vmatprep.subr.mxu0 0.0
    %1152 = vmatpush2.msra.mxu0 0.0
    %1153 = vmatprep.subr.mxu0 0.0
    %1154 = vmatpush2.msra.mxu0 0.0
    %1155 = vmatprep.subr.mxu0 0.0
    %1156 = vmatpush2.msra.mxu0 0.0
    %1157 = vmatprep.subr.mxu0 0.0
    %1158 = vmatpush2.msra.mxu0 0.0
    %1159 = vmatprep.subr.mxu0 0.0
    %1160 = vmatpush2.msra.mxu0 0.0
    %1161 = vmatprep.subr.mxu0 0.0
    %1162 = vmatpush2.msra.mxu0 0.0
    %1163 = vmatprep.subr.mxu0 0.0
    %1164 = vmatpush2.msra.mxu0 0.0
    %1165 = vmatprep.mubr.f32.mxu0 0.0
    %1166 = vmatmul.mubr.f32.gmra.mxu0 %v1078
    %v1167 = vpop.f32.mrf.mxu0
    %v1168 = vadd.f32 %v1075, %v1167
    %v1169 = vpop.f32.mrf.mxu0
    %1170 = vmatprep.mubr.f32.mxu0 0.0
    %1171 = vmatmul.mubr.f32.gmra.mxu0 %v1081
    %v1172 = vpop.f32.mrf.mxu0
    %v1173 = vadd.f32 %v1075, %v1172
    %v1174 = vpop.f32.mrf.mxu0
    %1175 = vmatprep.mubr.f32.mxu0 0.0
    %1176 = vmatmul.mubr.f32.gmra.mxu0 %v1084
    %v1177 = vpop.f32.mrf.mxu0
    %v1178 = vadd.f32 %v1075, %v1177
    %v1179 = vpop.f32.mrf.mxu0
    %1180 = vmatprep.mubr.f32.mxu0 0.0
    %1181 = vmatmul.mubr.f32.gmra.mxu0 %v1087
    %v1182 = vpop.f32.mrf.mxu0
    %v1183 = vadd.f32 %v1075, %v1182
    %v1184 = vpop.f32.mrf.mxu0
    %1185 = vmatprep.mubr.f32.mxu0 0.0
    %1186 = vmatmul.mubr.f32.gmra.mxu0 %v1090
    %v1187 = vpop.f32.mrf.mxu0
    %v1188 = vadd.f32 %v1075, %v1187
    %v1189 = vpop.f32.mrf.mxu0
    %1190 = vmatprep.mubr.f32.mxu0 0.0
    %1191 = vmatmul.mubr.f32.gmra.mxu0 %v1093
    %v1192 = vpop.f32.mrf.mxu0
    %v1193 = vadd.f32 %v1075, %v1192
    %v1194 = vpop.f32.mrf.mxu0
    %1195 = vmatprep.mubr.f32.mxu0 0.0
    %1196 = vmatmul.mubr.f32.gmra.mxu0 %v1096
    %v1197 = vpop.f32.mrf.mxu0
    %v1198 = vadd.f32 %v1075, %v1197
    %v1199 = vpop.f32.mrf.mxu0
    %1200 = vmatprep.mubr.f32.mxu0 0.0
    %1201 = vmatmul.mubr.f32.gmra.mxu0 %v1099
    %v1202 = vpop.f32.mrf.mxu0
    %v1203 = vadd.f32 %v1075, %v1202
    %v1204 = vpop.f32.mrf.mxu0
    %1205 = vdwg.mxu0
    %v1206 = vld [vmem:[#allocation3] sm:$0xff]
    %v1207 = vld [vmem:[#allocation3 + $0x8] sm:$0xff]
    %v1208 = vld [vmem:[#allocation3 + $0x10] sm:$0xff]
    %v1209 = vld [vmem:[#allocation3 + $0x18] sm:$0xff]
    %1210 = vmatprep.subr.mxu0 0.0
    %1211 = vmatpush1.msra.mxu0 0.0
    %1212 = vmatprep.subr.mxu0 0.0
    %1213 = vmatpush1.msra.mxu0 0.0
    %1214 = vmatprep.subr.mxu0 0.0
    %1215 = vmatpush1.msra.mxu0 0.0
    %1216 = vmatprep.subr.mxu0 0.0
    %1217 = vmatpush1.msra.mxu0 0.0
    %1218 = vmatprep.subr.mxu0 0.0
    %1219 = vmatpush1.msra.mxu0 0.0
    %1220 = vmatprep.subr.mxu0 0.0
    %1221 = vmatpush1.msra.mxu0 0.0
    %1222 = vmatprep.subr.mxu0 0.0
    %1223 = vmatpush1.msra.mxu0 0.0
    %1224 = vmatprep.subr.mxu0 0.0
    %1225 = vmatpush1.msra.mxu0 0.0
    %1226 = vmatprep.subr.mxu0 0.0
    %1227 = vmatpush1.msra.mxu0 0.0
    %1228 = vmatprep.subr.mxu0 0.0
    %1229 = vmatpush1.msra.mxu0 0.0
    %1230 = vmatprep.subr.mxu0 0.0
    %1231 = vmatpush1.msra.mxu0 0.0
    %1232 = vmatprep.subr.mxu0 0.0
    %1233 = vmatpush1.msra.mxu0 0.0
    %1234 = vmatprep.subr.mxu0 0.0
    %1235 = vmatpush1.msra.mxu0 %v1209
    %1236 = vmatprep.subr.mxu0 0.0
    %1237 = vmatpush1.msra.mxu0 %v1208
    %1238 = vmatprep.subr.mxu0 0.0
    %1239 = vmatpush1.msra.mxu0 %v1207
    %1240 = vmatprep.subr.mxu0 0.0
    %1241 = vmatpush1.msra.mxu0 %v1206
    %1242 = vmatprep.subr.mxu0 0.0
    %1243 = vmatpush2.msra.mxu0 0.0
    %1244 = vmatprep.subr.mxu0 0.0
    %1245 = vmatpush2.msra.mxu0 0.0
    %1246 = vmatprep.subr.mxu0 0.0
    %1247 = vmatpush2.msra.mxu0 0.0
    %1248 = vmatprep.subr.mxu0 0.0
    %1249 = vmatpush2.msra.mxu0 0.0
    %1250 = vmatprep.subr.mxu0 0.0
    %1251 = vmatpush2.msra.mxu0 0.0
    %1252 = vmatprep.subr.mxu0 0.0
    %1253 = vmatpush2.msra.mxu0 0.0
    %1254 = vmatprep.subr.mxu0 0.0
    %1255 = vmatpush2.msra.mxu0 0.0
    %1256 = vmatprep.subr.mxu0 0.0
    %1257 = vmatpush2.msra.mxu0 0.0
    %1258 = vmatprep.subr.mxu0 0.0
    %1259 = vmatpush2.msra.mxu0 0.0
    %1260 = vmatprep.subr.mxu0 0.0
    %1261 = vmatpush2.msra.mxu0 0.0
    %1262 = vmatprep.subr.mxu0 0.0
    %1263 = vmatpush2.msra.mxu0 0.0
    %1264 = vmatprep.subr.mxu0 0.0
    %1265 = vmatpush2.msra.mxu0 0.0
    %1266 = vmatprep.subr.mxu0 0.0
    %1267 = vmatpush2.msra.mxu0 0.0
    %1268 = vmatprep.subr.mxu0 0.0
    %1269 = vmatpush2.msra.mxu0 0.0
    %1270 = vmatprep.subr.mxu0 0.0
    %1271 = vmatpush2.msra.mxu0 0.0
    %1272 = vmatprep.subr.mxu0 0.0
    %1273 = vmatpush2.msra.mxu0 0.0
    %1274 = vmatprep.mubr.f32.mxu0 0.0
    %1275 = vmatmul.mubr.f32.gmra.mxu0 %v214
    %v1276 = vpop.f32.mrf.mxu0
    %v1277 = vadd.f32 0.0, %v1276
    %v1278 = vpop.f32.mrf.mxu0
    %1279 = vdwg.mxu0
    %v1280 = vadd.f32 %v1168, %v1277
    %v1281 = vxor.u32 %v1280, 2147483648
    %v1282 = vmul.f32 %v1281, 1.442695
    %v1283 = vpow.pop %v1282
    %v1284 = vadd.f32 %v1283, 1.0
    %v1285 = vrcp.pop %v1284
    %v1286 = vmul.f32 1.0, %v1285
    %v1287 = vtanh.pop %v1280
    %v1288 = vmul.f32 %v1286, 0.0
    %1290 = vrot.lane.b32.xlu0 %v1287, 64
    %v1291 = vpop.permute.xlu0 %1290
    %v1293 = vmul.f32 %v1286, %v1291
    %1295 = vrot.lane.b32.xlu0 %v1293, 32
    %v1296 = vpop.permute.xlu0 %1295
    %v1298 = vadd.f32 %v1288, %v1296
    %v1299 = vtanh.pop %v1298
    %1301 = vrot.lane.b32.xlu0 %v1299, 64
    %v1302 = vpop.permute.xlu0 %1301
    %v1304 = vmul.f32 %v1286, %v1302
    %1306 = vrot.lane.b32.xlu0 %v1304, 32
    %v1307 = vpop.permute.xlu0 %1306
    %v1308 = vsel %vm212, %v1307, 0
    %1310 = vmatprep.subr.mxu0 0.0
    %1311 = vmatpush1.msra.mxu0 0.0
    %1312 = vmatprep.subr.mxu0 0.0
    %1313 = vmatpush1.msra.mxu0 0.0
    %1314 = vmatprep.subr.mxu0 0.0
    %1315 = vmatpush1.msra.mxu0 0.0
    %1316 = vmatprep.subr.mxu0 0.0
    %1317 = vmatpush1.msra.mxu0 0.0
    %1318 = vmatprep.subr.mxu0 0.0
    %1319 = vmatpush1.msra.mxu0 0.0
    %1320 = vmatprep.subr.mxu0 0.0
    %1321 = vmatpush1.msra.mxu0 0.0
    %1322 = vmatprep.subr.mxu0 0.0
    %1323 = vmatpush1.msra.mxu0 0.0
    %1324 = vmatprep.subr.mxu0 0.0
    %1325 = vmatpush1.msra.mxu0 0.0
    %1326 = vmatprep.subr.mxu0 0.0
    %1327 = vmatpush1.msra.mxu0 0.0
    %1328 = vmatprep.subr.mxu0 0.0
    %1329 = vmatpush1.msra.mxu0 0.0
    %1330 = vmatprep.subr.mxu0 0.0
    %1331 = vmatpush1.msra.mxu0 0.0
    %1332 = vmatprep.subr.mxu0 0.0
    %1333 = vmatpush1.msra.mxu0 0.0
    %1334 = vmatprep.subr.mxu0 0.0
    %1335 = vmatpush1.msra.mxu0 %v1209
    %1336 = vmatprep.subr.mxu0 0.0
    %1337 = vmatpush1.msra.mxu0 %v1208
    %1338 = vmatprep.subr.mxu0 0.0
    %1339 = vmatpush1.msra.mxu0 %v1207
    %1340 = vmatprep.subr.mxu0 0.0
    %1341 = vmatpush1.msra.mxu0 %v1206
    %1342 = vmatprep.subr.mxu0 0.0
    %1343 = vmatpush2.msra.mxu0 0.0
    %1344 = vmatprep.subr.mxu0 0.0
    %1345 = vmatpush2.msra.mxu0 0.0
    %1346 = vmatprep.subr.mxu0 0.0
    %1347 = vmatpush2.msra.mxu0 0.0
    %1348 = vmatprep.subr.mxu0 0.0
    %1349 = vmatpush2.msra.mxu0 0.0
    %1350 = vmatprep.subr.mxu0 0.0
    %1351 = vmatpush2.msra.mxu0 0.0
    %1352 = vmatprep.subr.mxu0 0.0
    %1353 = vmatpush2.msra.mxu0 0.0
    %1354 = vmatprep.subr.mxu0 0.0
    %1355 = vmatpush2.msra.mxu0 0.0
    %1356 = vmatprep.subr.mxu0 0.0
    %1357 = vmatpush2.msra.mxu0 0.0
    %1358 = vmatprep.subr.mxu0 0.0
    %1359 = vmatpush2.msra.mxu0 0.0
    %1360 = vmatprep.subr.mxu0 0.0
    %1361 = vmatpush2.msra.mxu0 0.0
    %1362 = vmatprep.subr.mxu0 0.0
    %1363 = vmatpush2.msra.mxu0 0.0
    %1364 = vmatprep.subr.mxu0 0.0
    %1365 = vmatpush2.msra.mxu0 0.0
    %1366 = vmatprep.subr.mxu0 0.0
    %1367 = vmatpush2.msra.mxu0 0.0
    %1368 = vmatprep.subr.mxu0 0.0
    %1369 = vmatpush2.msra.mxu0 0.0
    %1370 = vmatprep.subr.mxu0 0.0
    %1371 = vmatpush2.msra.mxu0 0.0
    %1372 = vmatprep.subr.mxu0 0.0
    %1373 = vmatpush2.msra.mxu0 0.0
    %1374 = vmatprep.mubr.f32.mxu0 0.0
    %1375 = vmatmul.mubr.f32.gmra.mxu0 %v1308
    %v1376 = vpop.f32.mrf.mxu0
    %v1377 = vadd.f32 0.0, %v1376
    %v1378 = vpop.f32.mrf.mxu0
    %1379 = vdwg.mxu0
    %v1380 = vadd.f32 %v1173, %v1377
    %v1381 = vxor.u32 %v1380, 2147483648
    %v1382 = vmul.f32 %v1381, 1.442695
    %v1383 = vpow.pop %v1382
    %v1384 = vadd.f32 %v1383, 1.0
    %v1385 = vrcp.pop %v1384
    %v1386 = vmul.f32 1.0, %v1385
    %v1387 = vtanh.pop %v1380
    %v1388 = vmul.f32 %v1386, %v1298
    %1390 = vrot.lane.b32.xlu0 %v1387, 64
    %v1391 = vpop.permute.xlu0 %1390
    %v1393 = vmul.f32 %v1386, %v1391
    %1395 = vrot.lane.b32.xlu0 %v1393, 32
    %v1396 = vpop.permute.xlu0 %1395
    %v1398 = vadd.f32 %v1388, %v1396
    %v1399 = vtanh.pop %v1398
    %1401 = vrot.lane.b32.xlu0 %v1399, 64
    %v1402 = vpop.permute.xlu0 %1401
    %v1404 = vmul.f32 %v1386, %v1402
    %1406 = vrot.lane.b32.xlu0 %v1404, 32
    %v1407 = vpop.permute.xlu0 %1406
    %v1408 = vsel %vm212, %v1407, 0
    %1410 = vmatprep.subr.mxu0 0.0
    %1411 = vmatpush1.msra.mxu0 0.0
    %1412 = vmatprep.subr.mxu0 0.0
    %1413 = vmatpush1.msra.mxu0 0.0
    %1414 = vmatprep.subr.mxu0 0.0
    %1415 = vmatpush1.msra.mxu0 0.0
    %1416 = vmatprep.subr.mxu0 0.0
    %1417 = vmatpush1.msra.mxu0 0.0
    %1418 = vmatprep.subr.mxu0 0.0
    %1419 = vmatpush1.msra.mxu0 0.0
    %1420 = vmatprep.subr.mxu0 0.0
    %1421 = vmatpush1.msra.mxu0 0.0
    %1422 = vmatprep.subr.mxu0 0.0
    %1423 = vmatpush1.msra.mxu0 0.0
    %1424 = vmatprep.subr.mxu0 0.0
    %1425 = vmatpush1.msra.mxu0 0.0
    %1426 = vmatprep.subr.mxu0 0.0
    %1427 = vmatpush1.msra.mxu0 0.0
    %1428 = vmatprep.subr.mxu0 0.0
    %1429 = vmatpush1.msra.mxu0 0.0
    %1430 = vmatprep.subr.mxu0 0.0
    %1431 = vmatpush1.msra.mxu0 0.0
    %1432 = vmatprep.subr.mxu0 0.0
    %1433 = vmatpush1.msra.mxu0 0.0
    %1434 = vmatprep.subr.mxu0 0.0
    %1435 = vmatpush1.msra.mxu0 %v1209
    %1436 = vmatprep.subr.mxu0 0.0
    %1437 = vmatpush1.msra.mxu0 %v1208
    %1438 = vmatprep.subr.mxu0 0.0
    %1439 = vmatpush1.msra.mxu0 %v1207
    %1440 = vmatprep.subr.mxu0 0.0
    %1441 = vmatpush1.msra.mxu0 %v1206
    %1442 = vmatprep.subr.mxu0 0.0
    %1443 = vmatpush2.msra.mxu0 0.0
    %1444 = vmatprep.subr.mxu0 0.0
    %1445 = vmatpush2.msra.mxu0 0.0
    %1446 = vmatprep.subr.mxu0 0.0
    %1447 = vmatpush2.msra.mxu0 0.0
    %1448 = vmatprep.subr.mxu0 0.0
    %1449 = vmatpush2.msra.mxu0 0.0
    %1450 = vmatprep.subr.mxu0 0.0
    %1451 = vmatpush2.msra.mxu0 0.0
    %1452 = vmatprep.subr.mxu0 0.0
    %1453 = vmatpush2.msra.mxu0 0.0
    %1454 = vmatprep.subr.mxu0 0.0
    %1455 = vmatpush2.msra.mxu0 0.0
    %1456 = vmatprep.subr.mxu0 0.0
    %1457 = vmatpush2.msra.mxu0 0.0
    %1458 = vmatprep.subr.mxu0 0.0
    %1459 = vmatpush2.msra.mxu0 0.0
    %1460 = vmatprep.subr.mxu0 0.0
    %1461 = vmatpush2.msra.mxu0 0.0
    %1462 = vmatprep.subr.mxu0 0.0
    %1463 = vmatpush2.msra.mxu0 0.0
    %1464 = vmatprep.subr.mxu0 0.0
    %1465 = vmatpush2.msra.mxu0 0.0
    %1466 = vmatprep.subr.mxu0 0.0
    %1467 = vmatpush2.msra.mxu0 0.0
    %1468 = vmatprep.subr.mxu0 0.0
    %1469 = vmatpush2.msra.mxu0 0.0
    %1470 = vmatprep.subr.mxu0 0.0
    %1471 = vmatpush2.msra.mxu0 0.0
    %1472 = vmatprep.subr.mxu0 0.0
    %1473 = vmatpush2.msra.mxu0 0.0
    %1474 = vmatprep.mubr.f32.mxu0 0.0
    %1475 = vmatmul.mubr.f32.gmra.mxu0 %v1408
    %v1476 = vpop.f32.mrf.mxu0
    %v1477 = vadd.f32 0.0, %v1476
    %v1478 = vpop.f32.mrf.mxu0
    %1479 = vdwg.mxu0
    %v1480 = vadd.f32 %v1178, %v1477
    %v1481 = vxor.u32 %v1480, 2147483648
    %v1482 = vmul.f32 %v1481, 1.442695
    %v1483 = vpow.pop %v1482
    %v1484 = vadd.f32 %v1483, 1.0
    %v1485 = vrcp.pop %v1484
    %v1486 = vmul.f32 1.0, %v1485
    %v1487 = vtanh.pop %v1480
    %v1488 = vmul.f32 %v1486, %v1398
    %1490 = vrot.lane.b32.xlu0 %v1487, 64
    %v1491 = vpop.permute.xlu0 %1490
    %v1493 = vmul.f32 %v1486, %v1491
    %1495 = vrot.lane.b32.xlu0 %v1493, 32
    %v1496 = vpop.permute.xlu0 %1495
    %v1498 = vadd.f32 %v1488, %v1496
    %v1499 = vtanh.pop %v1498
    %1501 = vrot.lane.b32.xlu0 %v1499, 64
    %v1502 = vpop.permute.xlu0 %1501
    %v1504 = vmul.f32 %v1486, %v1502
    %1506 = vrot.lane.b32.xlu0 %v1504, 32
    %v1507 = vpop.permute.xlu0 %1506
    %v1508 = vsel %vm212, %v1507, 0
    %1510 = vmatprep.subr.mxu0 0.0
    %1511 = vmatpush1.msra.mxu0 0.0
    %1512 = vmatprep.subr.mxu0 0.0
    %1513 = vmatpush1.msra.mxu0 0.0
    %1514 = vmatprep.subr.mxu0 0.0
    %1515 = vmatpush1.msra.mxu0 0.0
    %1516 = vmatprep.subr.mxu0 0.0
    %1517 = vmatpush1.msra.mxu0 0.0
    %1518 = vmatprep.subr.mxu0 0.0
    %1519 = vmatpush1.msra.mxu0 0.0
    %1520 = vmatprep.subr.mxu0 0.0
    %1521 = vmatpush1.msra.mxu0 0.0
    %1522 = vmatprep.subr.mxu0 0.0
    %1523 = vmatpush1.msra.mxu0 0.0
    %1524 = vmatprep.subr.mxu0 0.0
    %1525 = vmatpush1.msra.mxu0 0.0
    %1526 = vmatprep.subr.mxu0 0.0
    %1527 = vmatpush1.msra.mxu0 0.0
    %1528 = vmatprep.subr.mxu0 0.0
    %1529 = vmatpush1.msra.mxu0 0.0
    %1530 = vmatprep.subr.mxu0 0.0
    %1531 = vmatpush1.msra.mxu0 0.0
    %1532 = vmatprep.subr.mxu0 0.0
    %1533 = vmatpush1.msra.mxu0 0.0
    %1534 = vmatprep.subr.mxu0 0.0
    %1535 = vmatpush1.msra.mxu0 %v1209
    %1536 = vmatprep.subr.mxu0 0.0
    %1537 = vmatpush1.msra.mxu0 %v1208
    %1538 = vmatprep.subr.mxu0 0.0
    %1539 = vmatpush1.msra.mxu0 %v1207
    %1540 = vmatprep.subr.mxu0 0.0
    %1541 = vmatpush1.msra.mxu0 %v1206
    %1542 = vmatprep.subr.mxu0 0.0
    %1543 = vmatpush2.msra.mxu0 0.0
    %1544 = vmatprep.subr.mxu0 0.0
    %1545 = vmatpush2.msra.mxu0 0.0
    %1546 = vmatprep.subr.mxu0 0.0
    %1547 = vmatpush2.msra.mxu0 0.0
    %1548 = vmatprep.subr.mxu0 0.0
    %1549 = vmatpush2.msra.mxu0 0.0
    %1550 = vmatprep.subr.mxu0 0.0
    %1551 = vmatpush2.msra.mxu0 0.0
    %1552 = vmatprep.subr.mxu0 0.0
    %1553 = vmatpush2.msra.mxu0 0.0
    %1554 = vmatprep.subr.mxu0 0.0
    %1555 = vmatpush2.msra.mxu0 0.0
    %1556 = vmatprep.subr.mxu0 0.0
    %1557 = vmatpush2.msra.mxu0 0.0
    %1558 = vmatprep.subr.mxu0 0.0
    %1559 = vmatpush2.msra.mxu0 0.0
    %1560 = vmatprep.subr.mxu0 0.0
    %1561 = vmatpush2.msra.mxu0 0.0
    %1562 = vmatprep.subr.mxu0 0.0
    %1563 = vmatpush2.msra.mxu0 0.0
    %1564 = vmatprep.subr.mxu0 0.0
    %1565 = vmatpush2.msra.mxu0 0.0
    %1566 = vmatprep.subr.mxu0 0.0
    %1567 = vmatpush2.msra.mxu0 0.0
    %1568 = vmatprep.subr.mxu0 0.0
    %1569 = vmatpush2.msra.mxu0 0.0
    %1570 = vmatprep.subr.mxu0 0.0
    %1571 = vmatpush2.msra.mxu0 0.0
    %1572 = vmatprep.subr.mxu0 0.0
    %1573 = vmatpush2.msra.mxu0 0.0
    %1574 = vmatprep.mubr.f32.mxu0 0.0
    %1575 = vmatmul.mubr.f32.gmra.mxu0 %v1508
    %v1576 = vpop.f32.mrf.mxu0
    %v1577 = vadd.f32 0.0, %v1576
    %v1578 = vpop.f32.mrf.mxu0
    %1579 = vdwg.mxu0
    %v1580 = vadd.f32 %v1183, %v1577
    %v1581 = vxor.u32 %v1580, 2147483648
    %v1582 = vmul.f32 %v1581, 1.442695
    %v1583 = vpow.pop %v1582
    %v1584 = vadd.f32 %v1583, 1.0
    %v1585 = vrcp.pop %v1584
    %v1586 = vmul.f32 1.0, %v1585
    %v1587 = vtanh.pop %v1580
    %v1588 = vmul.f32 %v1586, %v1498
    %1590 = vrot.lane.b32.xlu0 %v1587, 64
    %v1591 = vpop.permute.xlu0 %1590
    %v1593 = vmul.f32 %v1586, %v1591
    %1595 = vrot.lane.b32.xlu0 %v1593, 32
    %v1596 = vpop.permute.xlu0 %1595
    %v1598 = vadd.f32 %v1588, %v1596
    %v1599 = vtanh.pop %v1598
    %1601 = vrot.lane.b32.xlu0 %v1599, 64
    %v1602 = vpop.permute.xlu0 %1601
    %v1604 = vmul.f32 %v1586, %v1602
    %1606 = vrot.lane.b32.xlu0 %v1604, 32
    %v1607 = vpop.permute.xlu0 %1606
    %v1608 = vsel %vm212, %v1607, 0
    %1610 = vmatprep.subr.mxu0 0.0
    %1611 = vmatpush1.msra.mxu0 0.0
    %1612 = vmatprep.subr.mxu0 0.0
    %1613 = vmatpush1.msra.mxu0 0.0
    %1614 = vmatprep.subr.mxu0 0.0
    %1615 = vmatpush1.msra.mxu0 0.0
    %1616 = vmatprep.subr.mxu0 0.0
    %1617 = vmatpush1.msra.mxu0 0.0
    %1618 = vmatprep.subr.mxu0 0.0
    %1619 = vmatpush1.msra.mxu0 0.0
    %1620 = vmatprep.subr.mxu0 0.0
    %1621 = vmatpush1.msra.mxu0 0.0
    %1622 = vmatprep.subr.mxu0 0.0
    %1623 = vmatpush1.msra.mxu0 0.0
    %1624 = vmatprep.subr.mxu0 0.0
    %1625 = vmatpush1.msra.mxu0 0.0
    %1626 = vmatprep.subr.mxu0 0.0
    %1627 = vmatpush1.msra.mxu0 0.0
    %1628 = vmatprep.subr.mxu0 0.0
    %1629 = vmatpush1.msra.mxu0 0.0
    %1630 = vmatprep.subr.mxu0 0.0
    %1631 = vmatpush1.msra.mxu0 0.0
    %1632 = vmatprep.subr.mxu0 0.0
    %1633 = vmatpush1.msra.mxu0 0.0
    %1634 = vmatprep.subr.mxu0 0.0
    %1635 = vmatpush1.msra.mxu0 %v1209
    %1636 = vmatprep.subr.mxu0 0.0
    %1637 = vmatpush1.msra.mxu0 %v1208
    %1638 = vmatprep.subr.mxu0 0.0
    %1639 = vmatpush1.msra.mxu0 %v1207
    %1640 = vmatprep.subr.mxu0 0.0
    %1641 = vmatpush1.msra.mxu0 %v1206
    %1642 = vmatprep.subr.mxu0 0.0
    %1643 = vmatpush2.msra.mxu0 0.0
    %1644 = vmatprep.subr.mxu0 0.0
    %1645 = vmatpush2.msra.mxu0 0.0
    %1646 = vmatprep.subr.mxu0 0.0
    %1647 = vmatpush2.msra.mxu0 0.0
    %1648 = vmatprep.subr.mxu0 0.0
    %1649 = vmatpush2.msra.mxu0 0.0
    %1650 = vmatprep.subr.mxu0 0.0
    %1651 = vmatpush2.msra.mxu0 0.0
    %1652 = vmatprep.subr.mxu0 0.0
    %1653 = vmatpush2.msra.mxu0 0.0
    %1654 = vmatprep.subr.mxu0 0.0
    %1655 = vmatpush2.msra.mxu0 0.0
    %1656 = vmatprep.subr.mxu0 0.0
    %1657 = vmatpush2.msra.mxu0 0.0
    %1658 = vmatprep.subr.mxu0 0.0
    %1659 = vmatpush2.msra.mxu0 0.0
    %1660 = vmatprep.subr.mxu0 0.0
    %1661 = vmatpush2.msra.mxu0 0.0
    %1662 = vmatprep.subr.mxu0 0.0
    %1663 = vmatpush2.msra.mxu0 0.0
    %1664 = vmatprep.subr.mxu0 0.0
    %1665 = vmatpush2.msra.mxu0 0.0
    %1666 = vmatprep.subr.mxu0 0.0
    %1667 = vmatpush2.msra.mxu0 0.0
    %1668 = vmatprep.subr.mxu0 0.0
    %1669 = vmatpush2.msra.mxu0 0.0
    %1670 = vmatprep.subr.mxu0 0.0
    %1671 = vmatpush2.msra.mxu0 0.0
    %1672 = vmatprep.subr.mxu0 0.0
    %1673 = vmatpush2.msra.mxu0 0.0
    %1674 = vmatprep.mubr.f32.mxu0 0.0
    %1675 = vmatmul.mubr.f32.gmra.mxu0 %v1608
    %v1676 = vpop.f32.mrf.mxu0
    %v1677 = vadd.f32 0.0, %v1676
    %v1678 = vpop.f32.mrf.mxu0
    %1679 = vdwg.mxu0
    %v1680 = vadd.f32 %v1188, %v1677
    %v1681 = vxor.u32 %v1680, 2147483648
    %v1682 = vmul.f32 %v1681, 1.442695
    %v1683 = vpow.pop %v1682
    %v1684 = vadd.f32 %v1683, 1.0
    %v1685 = vrcp.pop %v1684
    %v1686 = vmul.f32 1.0, %v1685
    %v1687 = vtanh.pop %v1680
    %v1688 = vmul.f32 %v1686, %v1598
    %1690 = vrot.lane.b32.xlu0 %v1687, 64
    %v1691 = vpop.permute.xlu0 %1690
    %v1693 = vmul.f32 %v1686, %v1691
    %1695 = vrot.lane.b32.xlu0 %v1693, 32
    %v1696 = vpop.permute.xlu0 %1695
    %v1698 = vadd.f32 %v1688, %v1696
    %v1699 = vtanh.pop %v1698
    %1701 = vrot.lane.b32.xlu0 %v1699, 64
    %v1702 = vpop.permute.xlu0 %1701
    %v1704 = vmul.f32 %v1686, %v1702
    %1706 = vrot.lane.b32.xlu0 %v1704, 32
    %v1707 = vpop.permute.xlu0 %1706
    %v1708 = vsel %vm212, %v1707, 0
    %1710 = vmatprep.subr.mxu0 0.0
    %1711 = vmatpush1.msra.mxu0 0.0
    %1712 = vmatprep.subr.mxu0 0.0
    %1713 = vmatpush1.msra.mxu0 0.0
    %1714 = vmatprep.subr.mxu0 0.0
    %1715 = vmatpush1.msra.mxu0 0.0
    %1716 = vmatprep.subr.mxu0 0.0
    %1717 = vmatpush1.msra.mxu0 0.0
    %1718 = vmatprep.subr.mxu0 0.0
    %1719 = vmatpush1.msra.mxu0 0.0
    %1720 = vmatprep.subr.mxu0 0.0
    %1721 = vmatpush1.msra.mxu0 0.0
    %1722 = vmatprep.subr.mxu0 0.0
    %1723 = vmatpush1.msra.mxu0 0.0
    %1724 = vmatprep.subr.mxu0 0.0
    %1725 = vmatpush1.msra.mxu0 0.0
    %1726 = vmatprep.subr.mxu0 0.0
    %1727 = vmatpush1.msra.mxu0 0.0
    %1728 = vmatprep.subr.mxu0 0.0
    %1729 = vmatpush1.msra.mxu0 0.0
    %1730 = vmatprep.subr.mxu0 0.0
    %1731 = vmatpush1.msra.mxu0 0.0
    %1732 = vmatprep.subr.mxu0 0.0
    %1733 = vmatpush1.msra.mxu0 0.0
    %1734 = vmatprep.subr.mxu0 0.0
    %1735 = vmatpush1.msra.mxu0 %v1209
    %1736 = vmatprep.subr.mxu0 0.0
    %1737 = vmatpush1.msra.mxu0 %v1208
    %1738 = vmatprep.subr.mxu0 0.0
    %1739 = vmatpush1.msra.mxu0 %v1207
    %1740 = vmatprep.subr.mxu0 0.0
    %1741 = vmatpush1.msra.mxu0 %v1206
    %1742 = vmatprep.subr.mxu0 0.0
    %1743 = vmatpush2.msra.mxu0 0.0
    %1744 = vmatprep.subr.mxu0 0.0
    %1745 = vmatpush2.msra.mxu0 0.0
    %1746 = vmatprep.subr.mxu0 0.0
    %1747 = vmatpush2.msra.mxu0 0.0
    %1748 = vmatprep.subr.mxu0 0.0
    %1749 = vmatpush2.msra.mxu0 0.0
    %1750 = vmatprep.subr.mxu0 0.0
    %1751 = vmatpush2.msra.mxu0 0.0
    %1752 = vmatprep.subr.mxu0 0.0
    %1753 = vmatpush2.msra.mxu0 0.0
    %1754 = vmatprep.subr.mxu0 0.0
    %1755 = vmatpush2.msra.mxu0 0.0
    %1756 = vmatprep.subr.mxu0 0.0
    %1757 = vmatpush2.msra.mxu0 0.0
    %1758 = vmatprep.subr.mxu0 0.0
    %1759 = vmatpush2.msra.mxu0 0.0
    %1760 = vmatprep.subr.mxu0 0.0
    %1761 = vmatpush2.msra.mxu0 0.0
    %1762 = vmatprep.subr.mxu0 0.0
    %1763 = vmatpush2.msra.mxu0 0.0
    %1764 = vmatprep.subr.mxu0 0.0
    %1765 = vmatpush2.msra.mxu0 0.0
    %1766 = vmatprep.subr.mxu0 0.0
    %1767 = vmatpush2.msra.mxu0 0.0
    %1768 = vmatprep.subr.mxu0 0.0
    %1769 = vmatpush2.msra.mxu0 0.0
    %1770 = vmatprep.subr.mxu0 0.0
    %1771 = vmatpush2.msra.mxu0 0.0
    %1772 = vmatprep.subr.mxu0 0.0
    %1773 = vmatpush2.msra.mxu0 0.0
    %1774 = vmatprep.mubr.f32.mxu0 0.0
    %1775 = vmatmul.mubr.f32.gmra.mxu0 %v1708
    %v1776 = vpop.f32.mrf.mxu0
    %v1777 = vadd.f32 0.0, %v1776
    %v1778 = vpop.f32.mrf.mxu0
    %1779 = vdwg.mxu0
    %v1780 = vadd.f32 %v1193, %v1777
    %v1781 = vxor.u32 %v1780, 2147483648
    %v1782 = vmul.f32 %v1781, 1.442695
    %v1783 = vpow.pop %v1782
    %v1784 = vadd.f32 %v1783, 1.0
    %v1785 = vrcp.pop %v1784
    %v1786 = vmul.f32 1.0, %v1785
    %v1787 = vtanh.pop %v1780
    %v1788 = vmul.f32 %v1786, %v1698
    %1790 = vrot.lane.b32.xlu0 %v1787, 64
    %v1791 = vpop.permute.xlu0 %1790
    %v1793 = vmul.f32 %v1786, %v1791
    %1795 = vrot.lane.b32.xlu0 %v1793, 32
    %v1796 = vpop.permute.xlu0 %1795
    %v1798 = vadd.f32 %v1788, %v1796
    %v1799 = vtanh.pop %v1798
    %1801 = vrot.lane.b32.xlu0 %v1799, 64
    %v1802 = vpop.permute.xlu0 %1801
    %v1804 = vmul.f32 %v1786, %v1802
    %1806 = vrot.lane.b32.xlu0 %v1804, 32
    %v1807 = vpop.permute.xlu0 %1806
    %v1808 = vsel %vm212, %v1807, 0
    %1810 = vmatprep.subr.mxu0 0.0
    %1811 = vmatpush1.msra.mxu0 0.0
    %1812 = vmatprep.subr.mxu0 0.0
    %1813 = vmatpush1.msra.mxu0 0.0
    %1814 = vmatprep.subr.mxu0 0.0
    %1815 = vmatpush1.msra.mxu0 0.0
    %1816 = vmatprep.subr.mxu0 0.0
    %1817 = vmatpush1.msra.mxu0 0.0
    %1818 = vmatprep.subr.mxu0 0.0
    %1819 = vmatpush1.msra.mxu0 0.0
    %1820 = vmatprep.subr.mxu0 0.0
    %1821 = vmatpush1.msra.mxu0 0.0
    %1822 = vmatprep.subr.mxu0 0.0
    %1823 = vmatpush1.msra.mxu0 0.0
    %1824 = vmatprep.subr.mxu0 0.0
    %1825 = vmatpush1.msra.mxu0 0.0
    %1826 = vmatprep.subr.mxu0 0.0
    %1827 = vmatpush1.msra.mxu0 0.0
    %1828 = vmatprep.subr.mxu0 0.0
    %1829 = vmatpush1.msra.mxu0 0.0
    %1830 = vmatprep.subr.mxu0 0.0
    %1831 = vmatpush1.msra.mxu0 0.0
    %1832 = vmatprep.subr.mxu0 0.0
    %1833 = vmatpush1.msra.mxu0 0.0
    %1834 = vmatprep.subr.mxu0 0.0
    %1835 = vmatpush1.msra.mxu0 %v1209
    %1836 = vmatprep.subr.mxu0 0.0
    %1837 = vmatpush1.msra.mxu0 %v1208
    %1838 = vmatprep.subr.mxu0 0.0
    %1839 = vmatpush1.msra.mxu0 %v1207
    %1840 = vmatprep.subr.mxu0 0.0
    %1841 = vmatpush1.msra.mxu0 %v1206
    %1842 = vmatprep.subr.mxu0 0.0
    %1843 = vmatpush2.msra.mxu0 0.0
    %1844 = vmatprep.subr.mxu0 0.0
    %1845 = vmatpush2.msra.mxu0 0.0
    %1846 = vmatprep.subr.mxu0 0.0
    %1847 = vmatpush2.msra.mxu0 0.0
    %1848 = vmatprep.subr.mxu0 0.0
    %1849 = vmatpush2.msra.mxu0 0.0
    %1850 = vmatprep.subr.mxu0 0.0
    %1851 = vmatpush2.msra.mxu0 0.0
    %1852 = vmatprep.subr.mxu0 0.0
    %1853 = vmatpush2.msra.mxu0 0.0
    %1854 = vmatprep.subr.mxu0 0.0
    %1855 = vmatpush2.msra.mxu0 0.0
    %1856 = vmatprep.subr.mxu0 0.0
    %1857 = vmatpush2.msra.mxu0 0.0
    %1858 = vmatprep.subr.mxu0 0.0
    %1859 = vmatpush2.msra.mxu0 0.0
    %1860 = vmatprep.subr.mxu0 0.0
    %1861 = vmatpush2.msra.mxu0 0.0
    %1862 = vmatprep.subr.mxu0 0.0
    %1863 = vmatpush2.msra.mxu0 0.0
    %1864 = vmatprep.subr.mxu0 0.0
    %1865 = vmatpush2.msra.mxu0 0.0
    %1866 = vmatprep.subr.mxu0 0.0
    %1867 = vmatpush2.msra.mxu0 0.0
    %1868 = vmatprep.subr.mxu0 0.0
    %1869 = vmatpush2.msra.mxu0 0.0
    %1870 = vmatprep.subr.mxu0 0.0
    %1871 = vmatpush2.msra.mxu0 0.0
    %1872 = vmatprep.subr.mxu0 0.0
    %1873 = vmatpush2.msra.mxu0 0.0
    %1874 = vmatprep.mubr.f32.mxu0 0.0
    %1875 = vmatmul.mubr.f32.gmra.mxu0 %v1808
    %v1876 = vpop.f32.mrf.mxu0
    %v1877 = vadd.f32 0.0, %v1876
    %v1878 = vpop.f32.mrf.mxu0
    %1879 = vdwg.mxu0
    %v1880 = vadd.f32 %v1198, %v1877
    %v1881 = vxor.u32 %v1880, 2147483648
    %v1882 = vmul.f32 %v1881, 1.442695
    %v1883 = vpow.pop %v1882
    %v1884 = vadd.f32 %v1883, 1.0
    %v1885 = vrcp.pop %v1884
    %v1886 = vmul.f32 1.0, %v1885
    %v1887 = vtanh.pop %v1880
    %v1888 = vmul.f32 %v1886, %v1798
    %1890 = vrot.lane.b32.xlu0 %v1887, 64
    %v1891 = vpop.permute.xlu0 %1890
    %v1893 = vmul.f32 %v1886, %v1891
    %1895 = vrot.lane.b32.xlu0 %v1893, 32
    %v1896 = vpop.permute.xlu0 %1895
    %v1898 = vadd.f32 %v1888, %v1896
    %v1899 = vtanh.pop %v1898
    %1901 = vrot.lane.b32.xlu0 %v1899, 64
    %v1902 = vpop.permute.xlu0 %1901
    %v1904 = vmul.f32 %v1886, %v1902
    %1906 = vrot.lane.b32.xlu0 %v1904, 32
    %v1907 = vpop.permute.xlu0 %1906
    %v1908 = vsel %vm212, %v1907, 0
    %1910 = vmatprep.subr.mxu0 0.0
    %1911 = vmatpush1.msra.mxu0 0.0
    %1912 = vmatprep.subr.mxu0 0.0
    %1913 = vmatpush1.msra.mxu0 0.0
    %1914 = vmatprep.subr.mxu0 0.0
    %1915 = vmatpush1.msra.mxu0 0.0
    %1916 = vmatprep.subr.mxu0 0.0
    %1917 = vmatpush1.msra.mxu0 0.0
    %1918 = vmatprep.subr.mxu0 0.0
    %1919 = vmatpush1.msra.mxu0 0.0
    %1920 = vmatprep.subr.mxu0 0.0
    %1921 = vmatpush1.msra.mxu0 0.0
    %1922 = vmatprep.subr.mxu0 0.0
    %1923 = vmatpush1.msra.mxu0 0.0
    %1924 = vmatprep.subr.mxu0 0.0
    %1925 = vmatpush1.msra.mxu0 0.0
    %1926 = vmatprep.subr.mxu0 0.0
    %1927 = vmatpush1.msra.mxu0 0.0
    %1928 = vmatprep.subr.mxu0 0.0
    %1929 = vmatpush1.msra.mxu0 0.0
    %1930 = vmatprep.subr.mxu0 0.0
    %1931 = vmatpush1.msra.mxu0 0.0
    %1932 = vmatprep.subr.mxu0 0.0
    %1933 = vmatpush1.msra.mxu0 0.0
    %1934 = vmatprep.subr.mxu0 0.0
    %1935 = vmatpush1.msra.mxu0 %v1209
    %1936 = vmatprep.subr.mxu0 0.0
    %1937 = vmatpush1.msra.mxu0 %v1208
    %1938 = vmatprep.subr.mxu0 0.0
    %1939 = vmatpush1.msra.mxu0 %v1207
    %1940 = vmatprep.subr.mxu0 0.0
    %1941 = vmatpush1.msra.mxu0 %v1206
    %1942 = vmatprep.subr.mxu0 0.0
    %1943 = vmatpush2.msra.mxu0 0.0
    %1944 = vmatprep.subr.mxu0 0.0
    %1945 = vmatpush2.msra.mxu0 0.0
    %1946 = vmatprep.subr.mxu0 0.0
    %1947 = vmatpush2.msra.mxu0 0.0
    %1948 = vmatprep.subr.mxu0 0.0
    %1949 = vmatpush2.msra.mxu0 0.0
    %1950 = vmatprep.subr.mxu0 0.0
    %1951 = vmatpush2.msra.mxu0 0.0
    %1952 = vmatprep.subr.mxu0 0.0
    %1953 = vmatpush2.msra.mxu0 0.0
    %1954 = vmatprep.subr.mxu0 0.0
    %1955 = vmatpush2.msra.mxu0 0.0
    %1956 = vmatprep.subr.mxu0 0.0
    %1957 = vmatpush2.msra.mxu0 0.0
    %1958 = vmatprep.subr.mxu0 0.0
    %1959 = vmatpush2.msra.mxu0 0.0
    %1960 = vmatprep.subr.mxu0 0.0
    %1961 = vmatpush2.msra.mxu0 0.0
    %1962 = vmatprep.subr.mxu0 0.0
    %1963 = vmatpush2.msra.mxu0 0.0
    %1964 = vmatprep.subr.mxu0 0.0
    %1965 = vmatpush2.msra.mxu0 0.0
    %1966 = vmatprep.subr.mxu0 0.0
    %1967 = vmatpush2.msra.mxu0 0.0
    %1968 = vmatprep.subr.mxu0 0.0
    %1969 = vmatpush2.msra.mxu0 0.0
    %1970 = vmatprep.subr.mxu0 0.0
    %1971 = vmatpush2.msra.mxu0 0.0
    %1972 = vmatprep.subr.mxu0 0.0
    %1973 = vmatpush2.msra.mxu0 0.0
    %1974 = vmatprep.mubr.f32.mxu0 0.0
    %1975 = vmatmul.mubr.f32.gmra.mxu0 %v1908
    %v1976 = vpop.f32.mrf.mxu0
    %v1977 = vadd.f32 0.0, %v1976
    %v1978 = vpop.f32.mrf.mxu0
    %1979 = vdwg.mxu0
    %v1980 = vadd.f32 %v1203, %v1977
    %v1981 = vxor.u32 %v1980, 2147483648
    %v1982 = vmul.f32 %v1981, 1.442695
    %v1983 = vpow.pop %v1982
    %v1984 = vadd.f32 %v1983, 1.0
    %v1985 = vrcp.pop %v1984
    %v1986 = vmul.f32 1.0, %v1985
    %v1987 = vtanh.pop %v1980
    %v1988 = vmul.f32 %v1986, %v1898
    %1990 = vrot.lane.b32.xlu0 %v1987, 64
    %v1991 = vpop.permute.xlu0 %1990
    %v1993 = vmul.f32 %v1986, %v1991
    %1995 = vrot.lane.b32.xlu0 %v1993, 32
    %v1996 = vpop.permute.xlu0 %1995
    %v1998 = vadd.f32 %v1988, %v1996
    %v1999 = vtanh.pop %v1998
    %2001 = vrot.lane.b32.xlu0 %v1999, 64
    %v2002 = vpop.permute.xlu0 %2001
    %v2004 = vmul.f32 %v1986, %v2002
    %v2005 = vld [vmem:[#allocation6] sm:$0xff]
    %v2006 = vld [vmem:[#allocation6 + $0x8] sm:$0xff]
    %v2007 = vld [vmem:[#allocation6 + $0x10] sm:$0xff]
    %v2008 = vld [vmem:[#allocation6 + $0x18] sm:$0xff]
    %v2009 = vld [vmem:[%s8] sm:$0x1]
    %v2011 = vlaneseq
    %v2012 = vshrl.u32 %v2011, 7
    %v2013 = vsub.s32 0, %v2012
    %v2014 = vrot.slane %v2009, %v2013
    %2017 = vrot.lane.b32.xlu0 %v2004, 32
    %v2018 = vpop.permute.xlu0 %2017
    %v2019 = vsel %vm212, %v2018, 0
    %2021 = vmatprep.subr.mxu0 0.0
    %2022 = vmatpush1.msra.mxu0 0.0
    %2023 = vmatprep.subr.mxu0 0.0
    %2024 = vmatpush1.msra.mxu0 0.0
    %2025 = vmatprep.subr.mxu0 0.0
    %2026 = vmatpush1.msra.mxu0 0.0
    %2027 = vmatprep.subr.mxu0 0.0
    %2028 = vmatpush1.msra.mxu0 0.0
    %2029 = vmatprep.subr.mxu0 0.0
    %2030 = vmatpush1.msra.mxu0 0.0
    %2031 = vmatprep.subr.mxu0 0.0
    %2032 = vmatpush1.msra.mxu0 0.0
    %2033 = vmatprep.subr.mxu0 0.0
    %2034 = vmatpush1.msra.mxu0 0.0
    %2035 = vmatprep.subr.mxu0 0.0
    %2036 = vmatpush1.msra.mxu0 0.0
    %2037 = vmatprep.subr.mxu0 0.0
    %2038 = vmatpush1.msra.mxu0 0.0
    %2039 = vmatprep.subr.mxu0 0.0
    %2040 = vmatpush1.msra.mxu0 0.0
    %2041 = vmatprep.subr.mxu0 0.0
    %2042 = vmatpush1.msra.mxu0 0.0
    %2043 = vmatprep.subr.mxu0 0.0
    %2044 = vmatpush1.msra.mxu0 0.0
    %2045 = vmatprep.subr.mxu0 0.0
    %2046 = vmatpush1.msra.mxu0 %v2008
    %2047 = vmatprep.subr.mxu0 0.0
    %2048 = vmatpush1.msra.mxu0 %v2007
    %2049 = vmatprep.subr.mxu0 0.0
    %2050 = vmatpush1.msra.mxu0 %v2006
    %2051 = vmatprep.subr.mxu0 0.0
    %2052 = vmatpush1.msra.mxu0 %v2005
    %2053 = vmatprep.subr.mxu0 0.0
    %2054 = vmatpush2.msra.mxu0 0.0
    %2055 = vmatprep.subr.mxu0 0.0
    %2056 = vmatpush2.msra.mxu0 0.0
    %2057 = vmatprep.subr.mxu0 0.0
    %2058 = vmatpush2.msra.mxu0 0.0
    %2059 = vmatprep.subr.mxu0 0.0
    %2060 = vmatpush2.msra.mxu0 0.0
    %2061 = vmatprep.subr.mxu0 0.0
    %2062 = vmatpush2.msra.mxu0 0.0
    %2063 = vmatprep.subr.mxu0 0.0
    %2064 = vmatpush2.msra.mxu0 0.0
    %2065 = vmatprep.subr.mxu0 0.0
    %2066 = vmatpush2.msra.mxu0 0.0
    %2067 = vmatprep.subr.mxu0 0.0
    %2068 = vmatpush2.msra.mxu0 0.0
    %2069 = vmatprep.subr.mxu0 0.0
    %2070 = vmatpush2.msra.mxu0 0.0
    %2071 = vmatprep.subr.mxu0 0.0
    %2072 = vmatpush2.msra.mxu0 0.0
    %2073 = vmatprep.subr.mxu0 0.0
    %2074 = vmatpush2.msra.mxu0 0.0
    %2075 = vmatprep.subr.mxu0 0.0
    %2076 = vmatpush2.msra.mxu0 0.0
    %2077 = vmatprep.subr.mxu0 0.0
    %2078 = vmatpush2.msra.mxu0 0.0
    %2079 = vmatprep.subr.mxu0 0.0
    %2080 = vmatpush2.msra.mxu0 0.0
    %2081 = vmatprep.subr.mxu0 0.0
    %2082 = vmatpush2.msra.mxu0 0.0
    %2083 = vmatprep.subr.mxu0 0.0
    %2084 = vmatpush2.msra.mxu0 0.0
    %2085 = vmatprep.mubr.f32.mxu0 0.0
    %2086 = vmatmul.mubr.f32.gmra.mxu0 %v2019
    %v2087 = vpop.f32.mrf.mxu0
    %v2088 = vadd.f32 %v2014, %v2087
    %v2089 = vpop.f32.mrf.mxu0
    %2090 = vdwg.mxu0
    %2091 = vst [vmem:[#allocation8] sm:$0xff] %v2088
    // Predicated region
    $region46: #{tpu_custom_call.1} parent=1 // pred_check
      _
    $region47: #{tpu_custom_call.1} parent=1 // pred_check_branch
      %2093 = sbr.rel (0) target = $region49
    $region48: #{tpu_custom_call.1} parent=1 // pred_region
      %s2095 = ssub.s32 128, 128
      %2096 = vsyncadd [#allocation5], %s2095
      %s2098 = sshll.u32 [#allocation8], 4
      %s2099 = int_to_ptr.vmem [resolvable:$true] %s2098
      %2101 = dma.vmem_to_hbm [thread:$0]  %s2099, 128, %s9, [#allocation5]
    $region49: #{tpu_custom_call.1} parent=1 // pred_fallthru
      _
    // Predicated region
    $region50: #{tpu_custom_call.1} parent=1 // pred_check
      _
    $region51: #{tpu_custom_call.1} parent=1 // pred_check_branch
      %2103 = sbr.rel (0) target = $region53
    $region52: #{tpu_custom_call.1} parent=1 // pred_region
      %2104 = dma.done [#allocation5], 128
    $region53: #{tpu_custom_call.1} parent=1 // pred_fallthru
      _
    %2105 = vsyncpa [#allocation4], 1
    %2106 = vsyncpa [#allocation7], 1
    %2107 = vsyncpa [#allocation5], 1

</llo_original>
